<compile_context>
chip_gen: v6e
topology: v6e:2x2x1
jax: 0.10.0
libtpu: 0.0.40
codegen_flags: <defaults>
</compile_context>

<pallas_src>
import jax
import jax.numpy as jnp
from jax.experimental import pallas as pl
from jax.experimental.pallas import tpu as pltpu


def _round_up(n: int, m: int) -> int:
    return ((n + m - 1) // m) * m


def _fused_mlp_kernel(x_ref, w1_ref, b1_ref, w2_ref, b2_ref, o_ref):
    """out = relu(x @ W1 + b1) @ W2 + b2 for one batch tile resident in VMEM."""
    # x arrives f32 straight from HBM; cast to bf16 in-register for the MXU.
    x = x_ref[...].astype(jnp.bfloat16)                  # (TB, D_in)
    h = jnp.dot(x, w1_ref[...], preferred_element_type=jnp.float32)
    h = h + b1_ref[...]                                  # bias (1, H) f32, broadcasts
    h = jnp.maximum(h, 0.0)                              # ReLU in f32 (VPU)
    y = jnp.dot(h.astype(w2_ref.dtype), w2_ref[...],
                preferred_element_type=jnp.float32)
    y = y + b2_ref[...]                                  # bias (1, O) f32
    o_ref[...] = y.astype(o_ref.dtype)


def sequential_forward(x_nchw, w1, b1, w2, b2, *,
                       tile_b: int = 1024, min_pallas_batch: int = 512):
    """Sequential(Flatten, Linear(1024,128), ReLU, Linear(128,16)) on NCHW input.

    Returns f32 (the weight/Linear dtype, matching PyTorch Sequential output).
    """
    B = x_nchw.shape[0]
    d_in, d_hid = w1.shape
    d_out = w2.shape[1]

    # Flatten(start_dim=1) -- identical to PyTorch semantics.
    x2d = x_nchw.reshape(B, -1).astype(jnp.float32)
    assert x2d.shape[1] == d_in

    # Weights are tiny (~0.26 MiB) and read once per call: cast them to bf16 on
    # the host path so the VMEM-resident copy is half-size. Biases stay f32.
    w1b = w1.astype(jnp.bfloat16)
    w2b = w2.astype(jnp.bfloat16)
    b1r = b1.reshape(1, -1).astype(jnp.float32)
    b2r = b2.reshape(1, -1).astype(jnp.float32)

    # Tiny-batch fallback: a single-step Pallas launch would be pure overhead.
    if B < min_pallas_batch:
        h = jnp.maximum(x2d @ w1.astype(jnp.float32) + b1r, 0.0)
        return (h @ w2.astype(jnp.float32) + b2r).astype(jnp.float32)

    # Batch tile: big enough to amortize per-step overhead, small enough to fit
    # v5e's 16 MiB scoped-VMEM default with f32 double-buffering, and shrunk so
    # the grid always has >= 2 steps (lets "parallel" use both v7x TensorCores).
    tb = min(tile_b, _round_up(pl.cdiv(B, 2), 8))
    grid = (pl.cdiv(B, tb),)   # ragged last tile handled by Pallas edge masking

    flops = 2 * B * (d_in * d_hid + d_hid * d_out)
    bytes_accessed = (B * d_in * 4 + w1b.size * 2 + w2b.size * 2
                      + b1r.size * 4 + b2r.size * 4 + B * d_out * 4)

    out = pl.pallas_call(
        _fused_mlp_kernel,
        out_shape=jax.ShapeDtypeStruct((B, d_out), jnp.float32),
        grid_spec=pltpu.PrefetchScalarGridSpec(
            num_scalar_prefetch=0,
            grid=grid,
            in_specs=[
                # x: tiled over batch, auto-pipelined by BlockSpec.
                pl.BlockSpec((tb, d_in), lambda i: (i, 0)),
                # Weights / biases: resident across all grid steps.
                pl.BlockSpec((d_in, d_hid), lambda i: (0, 0)),
                pl.BlockSpec((1, d_hid), lambda i: (0, 0)),
                pl.BlockSpec((d_hid, d_out), lambda i: (0, 0)),
                pl.BlockSpec((1, d_out), lambda i: (0, 0)),
            ],
            out_specs=pl.BlockSpec((tb, d_out), lambda i: (i, 0)),
        ),
        compiler_params=pltpu.CompilerParams(
            dimension_semantics=("parallel",),
        ),
        cost_estimate=pl.CostEstimate(
            flops=flops, transcendentals=0, bytes_accessed=bytes_accessed),
    )(x2d, w1b, b1r, w2b, b2r)

    return out


def _reference(x_nchw, w1, b1, w2, b2):
    x = x_nchw.reshape(x_nchw.shape[0], -1).astype(jnp.float32)
    h = jnp.maximum(x @ w1 + b1, 0.0)
    return h @ w2 + b2


if __name__ == "__main__":
    key = jax.random.PRNGKey(0)
    kx, kx2, k1, k2, k3, k4 = jax.random.split(key, 6)

    C, H, W = 4, 16, 16
    D_IN = C * H * W                   # 1024
    D_HID = 128
    D_OUT = 16

    # Deterministic, PyTorch-Linear-style uniform init.
    bound1 = 1.0 / (D_IN ** 0.5)
    bound2 = 1.0 / (D_HID ** 0.5)
    w1 = jax.random.uniform(k1, (D_IN, D_HID), jnp.float32, -bound1, bound1)
    b1 = jax.random.uniform(k2, (D_HID,), jnp.float32, -bound1, bound1)
    w2 = jax.random.uniform(k3, (D_HID, D_OUT), jnp.float32, -bound2, bound2)
    b2 = jax.random.uniform(k4, (D_OUT,), jnp.float32, -bound2, bound2)

    # --- Test 1: tiny batch (B=2) -> jnp fallback path, tight tolerance. ---
    x_small = jax.random.normal(kx, (2, C, H, W), dtype=jnp.float32)
    out_small = jax.block_until_ready(sequential_forward(x_small, w1, b1, w2, b2))
    ref_small = _reference(x_small, w1, b1, w2, b2)
    assert out_small.shape == (2, D_OUT)
    assert jnp.allclose(out_small, ref_small, atol=1e-5, rtol=1e-5), \
        "fallback path mismatch vs reference"

    # --- Test 2: Pallas path with a ragged batch (exercises edge-block masking
    #     and the two-step grid for v7x's dual TensorCores). ---
    B = 600                            # not a multiple of the chosen tile
    x_big = jax.random.normal(kx2, (B, C, H, W), dtype=jnp.float32)
    out_big = jax.block_until_ready(sequential_forward(x_big, w1, b1, w2, b2))
    ref_big = _reference(x_big, w1, b1, w2, b2)
    assert out_big.shape == (B, D_OUT)
    # bf16 matmul operands with f32 accumulation -> loosened tolerance.
    assert jnp.allclose(out_big, ref_big, atol=2e-2, rtol=2e-2), \
        "pallas path mismatch vs reference"

    print("KERNEL_OK")
</pallas_src>

<mosaic_0001>
module attributes {stable_mosaic.version = 11 : i64} {
  func.func @_fused_mlp_kernel(%arg0: i32, %arg1: memref<304x1024xf32, #tpu.memory_space<vmem>>, %arg2: memref<1024x128xbf16, #tpu.memory_space<vmem>>, %arg3: memref<1x128xf32, #tpu.memory_space<vmem>>, %arg4: memref<128x16xbf16, #tpu.memory_space<vmem>>, %arg5: memref<1x16xf32, #tpu.memory_space<vmem>>, %arg6: memref<304x16xf32, #tpu.memory_space<vmem>>) attributes {dimension_semantics = [#tpu.dimension_semantics<parallel>], iteration_bounds = array<i64: 2>, scalar_prefetch = 0 : i64, scratch_operands = 0 : i64, tpu.core_type = #tpu.core_type<tc>, window_params = [{transform_indices = @transform_0, window_bounds = array<i64: 304, 1024>}, {pipeline_mode = #tpu.pipeline_mode<synchronous>, transform_indices = @transform_1, window_bounds = array<i64: 1024, 128>}, {pipeline_mode = #tpu.pipeline_mode<synchronous>, transform_indices = @transform_2, window_bounds = array<i64: 1, 128>}, {pipeline_mode = #tpu.pipeline_mode<synchronous>, transform_indices = @transform_3, window_bounds = array<i64: 128, 16>}, {pipeline_mode = #tpu.pipeline_mode<synchronous>, transform_indices = @transform_4, window_bounds = array<i64: 1, 16>}, {transform_indices = @transform_5, window_bounds = array<i64: 304, 16>}]} {
    %c0 = arith.constant 0 : index
    %c0_0 = arith.constant 0 : index
    %0 = vector.load %arg1[%c0, %c0_0] : memref<304x1024xf32, #tpu.memory_space<vmem>>, vector<304x1024xf32>
    %1 = arith.truncf %0 : vector<304x1024xf32> to vector<304x1024xbf16>
    %c0_1 = arith.constant 0 : index
    %c0_2 = arith.constant 0 : index
    %2 = vector.load %arg2[%c0_1, %c0_2] : memref<1024x128xbf16, #tpu.memory_space<vmem>>, vector<1024x128xbf16>
    %cst = arith.constant dense<0.000000e+00> : vector<304x128xf32>
    %3 = tpu.matmul %1, %2, %cst {dimension_numbers = #tpu.dot_dimension_numbers<[1], [0], [0], [1], [0, 0, 1, 1], [], []>} : vector<304x1024xbf16>, vector<1024x128xbf16>, vector<304x128xf32> -> vector<304x128xf32>
    %c0_3 = arith.constant 0 : index
    %c0_4 = arith.constant 0 : index
    %4 = vector.load %arg3[%c0_3, %c0_4] : memref<1x128xf32, #tpu.memory_space<vmem>>, vector<1x128xf32>
    %5 = vector.broadcast %4 : vector<1x128xf32> to vector<304x128xf32>
    %6 = arith.addf %3, %5 : vector<304x128xf32>
    %cst_5 = arith.constant 0.000000e+00 : f32
    %7 = vector.broadcast %cst_5 : f32 to vector<304x128xf32>
    %8 = arith.maximumf %6, %7 : vector<304x128xf32>
    %9 = arith.truncf %8 : vector<304x128xf32> to vector<304x128xbf16>
    %c0_6 = arith.constant 0 : index
    %c0_7 = arith.constant 0 : index
    %10 = vector.load %arg4[%c0_6, %c0_7] : memref<128x16xbf16, #tpu.memory_space<vmem>>, vector<128x16xbf16>
    %cst_8 = arith.constant dense<0.000000e+00> : vector<304x16xf32>
    %11 = tpu.matmul %9, %10, %cst_8 {dimension_numbers = #tpu.dot_dimension_numbers<[1], [0], [0], [1], [0, 0, 1, 1], [], []>} : vector<304x128xbf16>, vector<128x16xbf16>, vector<304x16xf32> -> vector<304x16xf32>
    %c0_9 = arith.constant 0 : index
    %c0_10 = arith.constant 0 : index
    %12 = vector.load %arg5[%c0_9, %c0_10] : memref<1x16xf32, #tpu.memory_space<vmem>>, vector<1x16xf32>
    %13 = vector.broadcast %12 : vector<1x16xf32> to vector<304x16xf32>
    %14 = arith.addf %11, %13 : vector<304x16xf32>
    %c0_11 = arith.constant 0 : index
    %c0_12 = arith.constant 0 : index
    %15 = vector.load %arg6[%c0_11, %c0_12] : memref<304x16xf32, #tpu.memory_space<vmem>>, vector<304x16xf32>
    tpu.vector_store %arg6[%c0_11, %c0_12], %14 {strides = array<i32>} : memref<304x16xf32, #tpu.memory_space<vmem>>, vector<304x16xf32>,
    return
  }
  func.func @transform_0(%arg0: i32) -> (i32, i32) {
    %c0_i32 = arith.constant 0 : i32
    %c0_i32_0 = arith.constant 0 : i32
    return %arg0, %c0_i32 : i32, i32
  }
  func.func @transform_1(%arg0: i32) -> (i32, i32) {
    %c0_i32 = arith.constant 0 : i32
    %c0_i32_0 = arith.constant 0 : i32
    %c0_i32_1 = arith.constant 0 : i32
    return %c0_i32, %c0_i32_0 : i32, i32
  }
  func.func @transform_2(%arg0: i32) -> (i32, i32) {
    %c0_i32 = arith.constant 0 : i32
    %c0_i32_0 = arith.constant 0 : i32
    %c0_i32_1 = arith.constant 0 : i32
    return %c0_i32, %c0_i32_0 : i32, i32
  }
  func.func @transform_3(%arg0: i32) -> (i32, i32) {
    %c0_i32 = arith.constant 0 : i32
    %c0_i32_0 = arith.constant 0 : i32
    %c0_i32_1 = arith.constant 0 : i32
    return %c0_i32, %c0_i32_0 : i32, i32
  }
  func.func @transform_4(%arg0: i32) -> (i32, i32) {
    %c0_i32 = arith.constant 0 : i32
    %c0_i32_0 = arith.constant 0 : i32
    %c0_i32_1 = arith.constant 0 : i32
    return %c0_i32, %c0_i32_0 : i32, i32
  }
  func.func @transform_5(%arg0: i32) -> (i32, i32) {
    %c0_i32 = arith.constant 0 : i32
    %c0_i32_0 = arith.constant 0 : i32
    return %arg0, %c0_i32 : i32, i32
  }
}

</mosaic_0001>

<llo_original>
// kernel: tpu_custom_call.1
$region0: #{tpu_custom_call.1}
  #allocation0 [shape = 'u32[]', space=smem, size = 0x4, offset = 0x4, fixed_abs, tag = 'smem constant byte address 0x4 - core index']
  #allocation1 [shape = 'u32[144,128]{1,0:T(1,128)}', space=vmem, size = 0x12000, scoped, tag = 'internal scratch']
  %s0 = inlined_call_operand.hbm [shape: f32[600,1024], index: 0, kind: input, shape index: {}]
  %s1 = inlined_call_operand.hbm [shape: bf16[1024,128], index: 1, kind: input, shape index: {}]
  %s2 = inlined_call_operand.hbm [shape: f32[1,128], index: 2, kind: input, shape index: {}]
  %s3 = inlined_call_operand.vmem [shape: bf16[128,16], index: 3, kind: input, shape index: {}]
  %s4 = inlined_call_operand.hbm [shape: f32[1,16], index: 4, kind: input, shape index: {}]
  %s5 = inlined_call_operand.vmem [shape: f32[600,16], index: 5, kind: output, shape index: {}]
  %s6 = sld [smem:[#allocation0]]
  $region117: #{tpu_custom_call.1} parent=0
    _
  %s8 = ssub.s32 1, %s6
  %s9 = scalar_select 0, %s8, %s6
  $region1: #{tpu_custom_call.1} parent=0
    #allocation2 [shape = 'u8[2490368]{0}', space=vmem, size = 0x260000, scoped, tag = 'input window, operand 0']
    #allocation3 [shape = 's32[2]{0}', space=sflag, size = 0x8, scoped, tag = 'scoped memory for tpu_custom_call.1']
    #allocation4 [shape = 'u8[262144]{0}', space=vmem, size = 0x40000, scoped, tag = 'input window, operand 1, single buffered']
    #allocation5 [shape = 's32[1]{0}', space=sflag, size = 0x4, scoped, tag = 'scoped memory for tpu_custom_call.1']
    #allocation6 [shape = 'u8[512]{0}', space=vmem, size = 0x400, scoped, tag = 'input window, operand 2, single buffered']
    #allocation7 [shape = 'u8[512]{0}', space=vmem, size = 0x400, scoped, tag = 'input window, operand 4, single buffered']
    #allocation8 [shape = 's32[1]{0}', space=sflag, size = 0x4, scoped, tag = 'scoped memory for tpu_custom_call.1']
    #allocation9 [shape = 'u8[311296]{0}', space=vmem, size = 0x4c000, scoped, tag = 'output window, operand 0']
    %10 = vsyncpa [#allocation3], 0
    %s11 = scalar_lea.sflag [#allocation3], 1
    %12 = vsyncpa %s11, 0
    %13 = vsyncpa [#allocation5], 0
    %14 = vsyncpa [#allocation8], 0
    loop: start=0, step=1, limit=4
    $region2: #{tpu_custom_call.1} parent=1 // loop_pre_header
      _
    $region3: #{tpu_custom_call.1} parent=1 // loop_header
      %s16 = sphi 0, %s20
      %p17 = scmp.ge.s32.totalorder %s16, 4
      %s26 = sphi 0, %s28
      %s29 = sphi 0, %s26
      %s30 = sphi 0, %s29
      %s46 = sphi 0, %s30
      %s50 = sphi 0, %s50
      %s52 = sphi 0, %s50
      %s53 = sphi 0, %s52
      %s67 = sphi 0, %s53
      %s71 = sphi 0, %s71
      %s73 = sphi 0, %s71
      %s74 = sphi 0, %s73
      %s88 = sphi 0, %s74
      %s92 = sphi 0, %s92
      %s94 = sphi 0, %s92
      %s95 = sphi 0, %s94
      %s109 = sphi 0, %s95
      %s113 = sphi 0, %s113
      %s115 = sphi 0, %s113
      %s116 = sphi 0, %s115
      %s130 = sphi 0, %s116
      %s136 = sphi 0, %s138
      %s139 = sphi 0, %s136
      %s140 = sphi 0, %s139
      %s156 = sphi 0, %s140
    $region4: #{tpu_custom_call.1} parent=1 // loop_header_branch
      %19 = sbr.rel (%p17) target = $region8
    $region5: #{tpu_custom_call.1} parent=1 // loop_body
      %s21 = ssub.s32 %s16, 1
      %s22 = ssub.s32 %s16, 2
      %s23 = sadd.s32 %s16, 1
      %s24 = ssub.s32 %s16, %s23
      %p25 = scmp.eq.s32.totalorder %s24, 0
      %s27 = sadd.s32 %s26, 1
      %s28 = scalar_select %p25, %s26, %s27
      %p31 = pneg %p25
      %p32 = scmp.eq.s32.totalorder %s16, 1
      %p33 = por %p31, %p32
      %p34 = scmp.ne.s32.totalorder %s26, %s29
      %p35 = scmp.eq.s32.totalorder %s16, 0
      %p36 = por %p34, %p35
      %p37 = scmp.ne.s32.totalorder %s26, %s29
      %p38 = scmp.eq.s32.totalorder %s21, 1
      %p39 = por %p37, %p38
      %p40 = scmp.ne.s32.totalorder %s29, %s30
      %p41 = scmp.eq.s32.totalorder %s21, 0
      %p42 = por %p40, %p41
      %p43 = scmp.ne.s32.totalorder %s29, %s30
      %p44 = scmp.eq.s32.totalorder %s22, 1
      %p45 = por %p43, %p44
      %p47 = scmp.ne.s32.totalorder %s30, %s46
      %p48 = scmp.eq.s32.totalorder %s22, 0
      %p49 = por %p47, %p48
      %s51 = sadd.s32 %s50, 1
      %p54 = scmp.eq.s32.totalorder %s16, 1
      %p55 = scmp.ne.s32.totalorder %s50, %s52
      %p56 = scmp.eq.s32.totalorder %s16, 0
      %p57 = por %p55, %p56
      %p58 = scmp.ne.s32.totalorder %s50, %s52
      %p59 = scmp.eq.s32.totalorder %s21, 1
      %p60 = por %p58, %p59
      %p61 = scmp.ne.s32.totalorder %s52, %s53
      %p62 = scmp.eq.s32.totalorder %s21, 0
      %p63 = por %p61, %p62
      %p64 = scmp.ne.s32.totalorder %s52, %s53
      %p65 = scmp.eq.s32.totalorder %s22, 1
      %p66 = por %p64, %p65
      %p68 = scmp.ne.s32.totalorder %s53, %s67
      %p69 = scmp.eq.s32.totalorder %s22, 0
      %p70 = por %p68, %p69
      %s72 = sadd.s32 %s71, 1
      %p75 = scmp.eq.s32.totalorder %s16, 1
      %p76 = scmp.ne.s32.totalorder %s71, %s73
      %p77 = scmp.eq.s32.totalorder %s16, 0
      %p78 = por %p76, %p77
      %p79 = scmp.ne.s32.totalorder %s71, %s73
      %p80 = scmp.eq.s32.totalorder %s21, 1
      %p81 = por %p79, %p80
      %p82 = scmp.ne.s32.totalorder %s73, %s74
      %p83 = scmp.eq.s32.totalorder %s21, 0
      %p84 = por %p82, %p83
      %p85 = scmp.ne.s32.totalorder %s73, %s74
      %p86 = scmp.eq.s32.totalorder %s22, 1
      %p87 = por %p85, %p86
      %p89 = scmp.ne.s32.totalorder %s74, %s88
      %p90 = scmp.eq.s32.totalorder %s22, 0
      %p91 = por %p89, %p90
      %s93 = sadd.s32 %s92, 1
      %p96 = scmp.eq.s32.totalorder %s16, 1
      %p97 = scmp.ne.s32.totalorder %s92, %s94
      %p98 = scmp.eq.s32.totalorder %s16, 0
      %p99 = por %p97, %p98
      %p100 = scmp.ne.s32.totalorder %s92, %s94
      %p101 = scmp.eq.s32.totalorder %s21, 1
      %p102 = por %p100, %p101
      %p103 = scmp.ne.s32.totalorder %s94, %s95
      %p104 = scmp.eq.s32.totalorder %s21, 0
      %p105 = por %p103, %p104
      %p106 = scmp.ne.s32.totalorder %s94, %s95
      %p107 = scmp.eq.s32.totalorder %s22, 1
      %p108 = por %p106, %p107
      %p110 = scmp.ne.s32.totalorder %s95, %s109
      %p111 = scmp.eq.s32.totalorder %s22, 0
      %p112 = por %p110, %p111
      %s114 = sadd.s32 %s113, 1
      %p117 = scmp.eq.s32.totalorder %s16, 1
      %p118 = scmp.ne.s32.totalorder %s113, %s115
      %p119 = scmp.eq.s32.totalorder %s16, 0
      %p120 = por %p118, %p119
      %p121 = scmp.ne.s32.totalorder %s113, %s115
      %p122 = scmp.eq.s32.totalorder %s21, 1
      %p123 = por %p121, %p122
      %p124 = scmp.ne.s32.totalorder %s115, %s116
      %p125 = scmp.eq.s32.totalorder %s21, 0
      %p126 = por %p124, %p125
      %p127 = scmp.ne.s32.totalorder %s115, %s116
      %p128 = scmp.eq.s32.totalorder %s22, 1
      %p129 = por %p127, %p128
      %p131 = scmp.ne.s32.totalorder %s116, %s130
      %p132 = scmp.eq.s32.totalorder %s22, 0
      %p133 = por %p131, %p132
      %s134 = ssub.s32 %s16, %s23
      %p135 = scmp.eq.s32.totalorder %s134, 0
      %s137 = sadd.s32 %s136, 1
      %s138 = scalar_select %p135, %s136, %s137
      %p141 = pneg %p135
      %p142 = scmp.eq.s32.totalorder %s16, 1
      %p143 = por %p141, %p142
      %p144 = scmp.ne.s32.totalorder %s136, %s139
      %p145 = scmp.eq.s32.totalorder %s16, 0
      %p146 = por %p144, %p145
      %p147 = scmp.ne.s32.totalorder %s136, %s139
      %p148 = scmp.eq.s32.totalorder %s21, 1
      %p149 = por %p147, %p148
      %p150 = scmp.ne.s32.totalorder %s139, %s140
      %p151 = scmp.eq.s32.totalorder %s21, 0
      %p152 = por %p150, %p151
      %p153 = scmp.ne.s32.totalorder %s139, %s140
      %p154 = scmp.eq.s32.totalorder %s22, 1
      %p155 = por %p153, %p154
      %p157 = scmp.ne.s32.totalorder %s140, %s156
      %p158 = scmp.eq.s32.totalorder %s22, 0
      %p159 = por %p157, %p158
      %p160 = scmp.le.s32.totalorder 1, %s16
      %p161 = scmp.lt.s32.totalorder %s16, 3
      %p162 = pnand %p160, %p161
      %p163 = pneg %p162
      // Predicated region
      $region9: #{tpu_custom_call.1} parent=5 // pred_check
        _
      $region10: #{tpu_custom_call.1} parent=5 // pred_check_branch
        %165 = sbr.rel (%p162) target = $region12
      $region11: #{tpu_custom_call.1} parent=5 // pred_region
        %s166 = ssub.s32 %s16, 1
        // Predicated region
        $region13: #{tpu_custom_call.1} parent=11 // pred_check
          %p167 = pneg %p63
        $region14: #{tpu_custom_call.1} parent=11 // pred_check_branch
          %169 = sbr.rel (%p167) target = $region16
        $region15: #{tpu_custom_call.1} parent=11 // pred_region
          %s171 = ssub.s32 8192, 8192
          %172 = vsyncadd [#allocation5], %s171
          %s173 = sshll.u32 [#allocation4], 4
          %s174 = int_to_ptr.vmem [resolvable:$true] %s173
          %179 = dma.hbm_to_vmem [thread:$0]  %s1, 8192, %s174, [#allocation5], 64, 64, 4
        $region16: #{tpu_custom_call.1} parent=11 // pred_fallthru
          _
        // Predicated region
        $region17: #{tpu_custom_call.1} parent=11 // pred_check
          %p180 = pneg %p84
        $region18: #{tpu_custom_call.1} parent=11 // pred_check_branch
          %182 = sbr.rel (%p180) target = $region20
        $region19: #{tpu_custom_call.1} parent=11 // pred_region
          %s184 = ssub.s32 16, 16
          %185 = vsyncadd [#allocation5], %s184
          %s187 = sshll.u32 [#allocation6], 4
          %s188 = int_to_ptr.vmem [resolvable:$true] %s187
          %190 = dma.hbm_to_vmem [thread:$0]  %s2, 16, %s188, [#allocation5]
        $region20: #{tpu_custom_call.1} parent=11 // pred_fallthru
          _
        // Predicated region
        $region21: #{tpu_custom_call.1} parent=11 // pred_check
          %p191 = pneg %p105
        $region22: #{tpu_custom_call.1} parent=11 // pred_check_branch
          %193 = sbr.rel (%p191) target = $region24
        $region23: #{tpu_custom_call.1} parent=11 // pred_region
          _
        $region24: #{tpu_custom_call.1} parent=11 // pred_fallthru
          _
        // Predicated region
        $region25: #{tpu_custom_call.1} parent=11 // pred_check
          %p194 = pneg %p126
        $region26: #{tpu_custom_call.1} parent=11 // pred_check_branch
          %196 = sbr.rel (%p194) target = $region28
        $region27: #{tpu_custom_call.1} parent=11 // pred_region
          %s198 = ssub.s32 16, 16
          %199 = vsyncadd [#allocation8], %s198
          %s201 = sshll.u32 [#allocation7], 4
          %s202 = int_to_ptr.vmem [resolvable:$true] %s201
          %204 = dma.hbm_to_vmem [thread:$0]  %s4, 16, %s202, [#allocation8]
        $region28: #{tpu_custom_call.1} parent=11 // pred_fallthru
          _
      $region12: #{tpu_custom_call.1} parent=5 // pred_fallthru
        _
      %p205 = scmp.lt.s32.totalorder %s16, 2
      // Predicated region
      $region29: #{tpu_custom_call.1} parent=5 // pred_check
        %p206 = pneg %p205
      $region30: #{tpu_custom_call.1} parent=5 // pred_check_branch
        %208 = sbr.rel (%p206) target = $region32
      $region31: #{tpu_custom_call.1} parent=5 // pred_region
        // Predicated region
        $region33: #{tpu_custom_call.1} parent=31 // pred_check
          %p209 = pneg %p36
        $region34: #{tpu_custom_call.1} parent=31 // pred_check_branch
          %211 = sbr.rel (%p209) target = $region36
        $region35: #{tpu_custom_call.1} parent=31 // pred_region
          %s212 = sand.u32 %s26, 1
          %s213 = scalar_lea.sflag [#allocation3], %s212
          %s214 = sand.u32 %s26, 1
          %s215 = smul.addr %s214, 2432
          %s216 = scalar_lea.vmem [#allocation2], %s215
          %s217 = smul.u32 38, %s16
          %s218 = ssub.s32 75, %s217
          %p219 = scmp.lt.s32.totalorder %s218, 38
          %s220 = scalar_select %p219, %s218, 38
          %s221 = smul.u32 128, %s220
          %s222 = smul.u32 %s221, 8
          %s224 = ssub.s32 38912, %s222
          %225 = vsyncadd %s213, %s224
          %p226 = scmp.ne.s32.totalorder 0, %s222
          %s227 = smul.addr %s217, 8
          %s228 = smul.addr %s227, 128
          %s229 = scalar_lea.hbm %s0, %s228
          %s230 = smul.u32 64, %s220
          %s231 = sshll.u32 %s216, 4
          %s232 = int_to_ptr.vmem [resolvable:$true] %s231
          %s233 = sshll.u32 %s230, 4
          %237 = dma.hbm_to_vmem [thread:$0]  (%p226), %s229, %s233, %s232, %s213, 1024, 1024, 64
        $region36: #{tpu_custom_call.1} parent=31 // pred_fallthru
          _
      $region32: #{tpu_custom_call.1} parent=5 // pred_fallthru
        _
      %p238 = scmp.le.s32.totalorder 1, %s16
      %p239 = scmp.lt.s32.totalorder %s16, 3
      %p240 = pnand %p238, %p239
      %p241 = pneg %p240
      // Predicated region
      $region37: #{tpu_custom_call.1} parent=5 // pred_check
        _
      $region38: #{tpu_custom_call.1} parent=5 // pred_check_branch
        %243 = sbr.rel (%p240) target = $region40
      $region39: #{tpu_custom_call.1} parent=5 // pred_region
        %s244 = ssub.s32 %s16, 1
        %s245 = sand.u32 %s29, 1
        %s246 = scalar_lea.sflag [#allocation3], %s245
        %s247 = sand.u32 %s29, 1
        %s248 = smul.addr %s247, 2432
        %s249 = scalar_lea.vmem [#allocation2], %s248
        // Predicated region
        $region41: #{tpu_custom_call.1} parent=39 // pred_check
          %p250 = pneg %p42
        $region42: #{tpu_custom_call.1} parent=39 // pred_check_branch
          %252 = sbr.rel (%p250) target = $region44
        $region43: #{tpu_custom_call.1} parent=39 // pred_region
          %253 = dma.done %s246, 38912
        $region44: #{tpu_custom_call.1} parent=39 // pred_fallthru
          _
        // Predicated region
        $region45: #{tpu_custom_call.1} parent=39 // pred_check
          %p254 = pneg %p63
        $region46: #{tpu_custom_call.1} parent=39 // pred_check_branch
          %256 = sbr.rel (%p254) target = $region48
        $region47: #{tpu_custom_call.1} parent=39 // pred_region
          %257 = dma.done [#allocation5], 8192
        $region48: #{tpu_custom_call.1} parent=39 // pred_fallthru
          _
        // Predicated region
        $region49: #{tpu_custom_call.1} parent=39 // pred_check
          %p258 = pneg %p84
        $region50: #{tpu_custom_call.1} parent=39 // pred_check_branch
          %260 = sbr.rel (%p258) target = $region52
        $region51: #{tpu_custom_call.1} parent=39 // pred_region
          %261 = dma.done [#allocation5], 16
        $region52: #{tpu_custom_call.1} parent=39 // pred_fallthru
          _
        // Predicated region
        $region53: #{tpu_custom_call.1} parent=39 // pred_check
          %p262 = pneg %p126
        $region54: #{tpu_custom_call.1} parent=39 // pred_check_branch
          %264 = sbr.rel (%p262) target = $region56
        $region55: #{tpu_custom_call.1} parent=39 // pred_region
          %265 = dma.done [#allocation8], 16
        $region56: #{tpu_custom_call.1} parent=39 // pred_fallthru
          _
        %s266 = sand.u32 %s29, 1
        %s267 = scalar_lea.sflag [#allocation3], %s266
        %s268 = sand.u32 %s29, 1
        %s269 = smul.addr %s268, 2432
        %s270 = scalar_lea.vmem [#allocation2], %s269
        %p271 = pneg %p42
        %p272 = pneg %p39
        %p273 = pneg %p63
        %p274 = pneg %p60
        %p275 = pneg %p84
        %p276 = pneg %p81
        %p277 = pneg %p105
        %p278 = pneg %p102
        %p279 = pneg %p126
        %p280 = pneg %p123
        %p281 = pneg %p152
        %p282 = pneg %p149
        %s283 = sand.u32 %s139, 1
        %s284 = sand.u32 %s139, 1
        %s285 = smul.addr %s284, 304
        %s286 = scalar_lea.vmem [#allocation9], %s285
        %s287 = smul.u32 38, %s21
        %s288 = ssub.s32 75, %s287
        %p289 = scmp.lt.s32.totalorder %s288, 38
        %s290 = scalar_select %p289, %s288, 38
        %s291 = smul.u32 128, %s290
        %s292 = smul.u32 %s291, 8
        %s293 = smul.u32 38, %s21
        %s294 = ssub.s32 75, %s293
        %p295 = scmp.lt.s32.totalorder %s294, 38
        %s296 = scalar_select %p295, %s294, 38
        %s297 = smul.u32 128, %s296
        %v299 = vld [vmem:[%s249] sm:$0xff]
        %v300 = vld [vmem:[%s249 + $0x8] sm:$0xff]
        %v301 = vld [vmem:[%s249 + $0x10] sm:$0xff]
        %v302 = vld [vmem:[%s249 + $0x18] sm:$0xff]
        %v303 = vld [vmem:[%s249 + $0x20] sm:$0xff]
        %v304 = vld [vmem:[%s249 + $0x28] sm:$0xff]
        %v305 = vld [vmem:[%s249 + $0x30] sm:$0xff]
        %v306 = vld [vmem:[%s249 + $0x38] sm:$0xff]
        %v307 = vld [vmem:[%s249 + $0x40] sm:$0xff]
        %v308 = vld [vmem:[%s249 + $0x48] sm:$0xff]
        %v309 = vld [vmem:[%s249 + $0x50] sm:$0xff]
        %v310 = vld [vmem:[%s249 + $0x58] sm:$0xff]
        %v311 = vld [vmem:[%s249 + $0x60] sm:$0xff]
        %v312 = vld [vmem:[%s249 + $0x68] sm:$0xff]
        %v313 = vld [vmem:[%s249 + $0x70] sm:$0xff]
        %v314 = vld [vmem:[%s249 + $0x78] sm:$0xff]
        %v315 = vld [vmem:[%s249 + $0x80] sm:$0xff]
        %v316 = vld [vmem:[%s249 + $0x88] sm:$0xff]
        %v317 = vld [vmem:[%s249 + $0x90] sm:$0xff]
        %v318 = vld [vmem:[%s249 + $0x98] sm:$0xff]
        %v319 = vld [vmem:[%s249 + $0xa0] sm:$0xff]
        %v320 = vld [vmem:[%s249 + $0xa8] sm:$0xff]
        %v321 = vld [vmem:[%s249 + $0xb0] sm:$0xff]
        %v322 = vld [vmem:[%s249 + $0xb8] sm:$0xff]
        %v323 = vld [vmem:[%s249 + $0xc0] sm:$0xff]
        %v324 = vld [vmem:[%s249 + $0xc8] sm:$0xff]
        %v325 = vld [vmem:[%s249 + $0xd0] sm:$0xff]
        %v326 = vld [vmem:[%s249 + $0xd8] sm:$0xff]
        %v327 = vld [vmem:[%s249 + $0xe0] sm:$0xff]
        %v328 = vld [vmem:[%s249 + $0xe8] sm:$0xff]
        %v329 = vld [vmem:[%s249 + $0xf0] sm:$0xff]
        %v330 = vld [vmem:[%s249 + $0xf8] sm:$0xff]
        %v331 = vld [vmem:[%s249 + $0x100] sm:$0xff]
        %v332 = vld [vmem:[%s249 + $0x108] sm:$0xff]
        %v333 = vld [vmem:[%s249 + $0x110] sm:$0xff]
        %v334 = vld [vmem:[%s249 + $0x118] sm:$0xff]
        %v335 = vld [vmem:[%s249 + $0x120] sm:$0xff]
        %v336 = vld [vmem:[%s249 + $0x128] sm:$0xff]
        %v337 = vld [vmem:[%s249 + $0x130] sm:$0xff]
        %v338 = vld [vmem:[%s249 + $0x138] sm:$0xff]
        %v339 = vld [vmem:[%s249 + $0x140] sm:$0xff]
        %v340 = vld [vmem:[%s249 + $0x148] sm:$0xff]
        %v341 = vld [vmem:[%s249 + $0x150] sm:$0xff]
        %v342 = vld [vmem:[%s249 + $0x158] sm:$0xff]
        %v343 = vld [vmem:[%s249 + $0x160] sm:$0xff]
        %v344 = vld [vmem:[%s249 + $0x168] sm:$0xff]
        %v345 = vld [vmem:[%s249 + $0x170] sm:$0xff]
        %v346 = vld [vmem:[%s249 + $0x178] sm:$0xff]
        %v347 = vld [vmem:[%s249 + $0x180] sm:$0xff]
        %v348 = vld [vmem:[%s249 + $0x188] sm:$0xff]
        %v349 = vld [vmem:[%s249 + $0x190] sm:$0xff]
        %v350 = vld [vmem:[%s249 + $0x198] sm:$0xff]
        %v351 = vld [vmem:[%s249 + $0x1a0] sm:$0xff]
        %v352 = vld [vmem:[%s249 + $0x1a8] sm:$0xff]
        %v353 = vld [vmem:[%s249 + $0x1b0] sm:$0xff]
        %v354 = vld [vmem:[%s249 + $0x1b8] sm:$0xff]
        %v355 = vld [vmem:[%s249 + $0x1c0] sm:$0xff]
        %v356 = vld [vmem:[%s249 + $0x1c8] sm:$0xff]
        %v357 = vld [vmem:[%s249 + $0x1d0] sm:$0xff]
        %v358 = vld [vmem:[%s249 + $0x1d8] sm:$0xff]
        %v359 = vld [vmem:[%s249 + $0x1e0] sm:$0xff]
        %v360 = vld [vmem:[%s249 + $0x1e8] sm:$0xff]
        %v361 = vld [vmem:[%s249 + $0x1f0] sm:$0xff]
        %v362 = vld [vmem:[%s249 + $0x1f8] sm:$0xff]
        %v363 = vld [vmem:[%s249 + $0x200] sm:$0xff]
        %v364 = vld [vmem:[%s249 + $0x208] sm:$0xff]
        %v365 = vld [vmem:[%s249 + $0x210] sm:$0xff]
        %v366 = vld [vmem:[%s249 + $0x218] sm:$0xff]
        %v367 = vld [vmem:[%s249 + $0x220] sm:$0xff]
        %v368 = vld [vmem:[%s249 + $0x228] sm:$0xff]
        %v369 = vld [vmem:[%s249 + $0x230] sm:$0xff]
        %v370 = vld [vmem:[%s249 + $0x238] sm:$0xff]
        %v371 = vld [vmem:[%s249 + $0x240] sm:$0xff]
        %v372 = vld [vmem:[%s249 + $0x248] sm:$0xff]
        %v373 = vld [vmem:[%s249 + $0x250] sm:$0xff]
        %v374 = vld [vmem:[%s249 + $0x258] sm:$0xff]
        %v375 = vld [vmem:[%s249 + $0x260] sm:$0xff]
        %v376 = vld [vmem:[%s249 + $0x268] sm:$0xff]
        %v377 = vld [vmem:[%s249 + $0x270] sm:$0xff]
        %v378 = vld [vmem:[%s249 + $0x278] sm:$0xff]
        %v379 = vld [vmem:[%s249 + $0x280] sm:$0xff]
        %v380 = vld [vmem:[%s249 + $0x288] sm:$0xff]
        %v381 = vld [vmem:[%s249 + $0x290] sm:$0xff]
        %v382 = vld [vmem:[%s249 + $0x298] sm:$0xff]
        %v383 = vld [vmem:[%s249 + $0x2a0] sm:$0xff]
        %v384 = vld [vmem:[%s249 + $0x2a8] sm:$0xff]
        %v385 = vld [vmem:[%s249 + $0x2b0] sm:$0xff]
        %v386 = vld [vmem:[%s249 + $0x2b8] sm:$0xff]
        %v387 = vld [vmem:[%s249 + $0x2c0] sm:$0xff]
        %v388 = vld [vmem:[%s249 + $0x2c8] sm:$0xff]
        %v389 = vld [vmem:[%s249 + $0x2d0] sm:$0xff]
        %v390 = vld [vmem:[%s249 + $0x2d8] sm:$0xff]
        %v391 = vld [vmem:[%s249 + $0x2e0] sm:$0xff]
        %v392 = vld [vmem:[%s249 + $0x2e8] sm:$0xff]
        %v393 = vld [vmem:[%s249 + $0x2f0] sm:$0xff]
        %v394 = vld [vmem:[%s249 + $0x2f8] sm:$0xff]
        %v395 = vld [vmem:[%s249 + $0x300] sm:$0xff]
        %v396 = vld [vmem:[%s249 + $0x308] sm:$0xff]
        %v397 = vld [vmem:[%s249 + $0x310] sm:$0xff]
        %v398 = vld [vmem:[%s249 + $0x318] sm:$0xff]
        %v399 = vld [vmem:[%s249 + $0x320] sm:$0xff]
        %v400 = vld [vmem:[%s249 + $0x328] sm:$0xff]
        %v401 = vld [vmem:[%s249 + $0x330] sm:$0xff]
        %v402 = vld [vmem:[%s249 + $0x338] sm:$0xff]
        %v403 = vld [vmem:[%s249 + $0x340] sm:$0xff]
        %v404 = vld [vmem:[%s249 + $0x348] sm:$0xff]
        %v405 = vld [vmem:[%s249 + $0x350] sm:$0xff]
        %v406 = vld [vmem:[%s249 + $0x358] sm:$0xff]
        %v407 = vld [vmem:[%s249 + $0x360] sm:$0xff]
        %v408 = vld [vmem:[%s249 + $0x368] sm:$0xff]
        %v409 = vld [vmem:[%s249 + $0x370] sm:$0xff]
        %v410 = vld [vmem:[%s249 + $0x378] sm:$0xff]
        %v411 = vld [vmem:[%s249 + $0x380] sm:$0xff]
        %v412 = vld [vmem:[%s249 + $0x388] sm:$0xff]
        %v413 = vld [vmem:[%s249 + $0x390] sm:$0xff]
        %v414 = vld [vmem:[%s249 + $0x398] sm:$0xff]
        %v415 = vld [vmem:[%s249 + $0x3a0] sm:$0xff]
        %v416 = vld [vmem:[%s249 + $0x3a8] sm:$0xff]
        %v417 = vld [vmem:[%s249 + $0x3b0] sm:$0xff]
        %v418 = vld [vmem:[%s249 + $0x3b8] sm:$0xff]
        %v419 = vld [vmem:[%s249 + $0x3c0] sm:$0xff]
        %v420 = vld [vmem:[%s249 + $0x3c8] sm:$0xff]
        %v421 = vld [vmem:[%s249 + $0x3d0] sm:$0xff]
        %v422 = vld [vmem:[%s249 + $0x3d8] sm:$0xff]
        %v423 = vld [vmem:[%s249 + $0x3e0] sm:$0xff]
        %v424 = vld [vmem:[%s249 + $0x3e8] sm:$0xff]
        %v425 = vld [vmem:[%s249 + $0x3f0] sm:$0xff]
        %v426 = vld [vmem:[%s249 + $0x3f8] sm:$0xff]
        %v427 = vld [vmem:[%s249 + $0x400] sm:$0xff]
        %v428 = vld [vmem:[%s249 + $0x408] sm:$0xff]
        %v429 = vld [vmem:[%s249 + $0x410] sm:$0xff]
        %v430 = vld [vmem:[%s249 + $0x418] sm:$0xff]
        %v431 = vld [vmem:[%s249 + $0x420] sm:$0xff]
        %v432 = vld [vmem:[%s249 + $0x428] sm:$0xff]
        %v433 = vld [vmem:[%s249 + $0x430] sm:$0xff]
        %v434 = vld [vmem:[%s249 + $0x438] sm:$0xff]
        %v435 = vld [vmem:[%s249 + $0x440] sm:$0xff]
        %v436 = vld [vmem:[%s249 + $0x448] sm:$0xff]
        %v437 = vld [vmem:[%s249 + $0x450] sm:$0xff]
        %v438 = vld [vmem:[%s249 + $0x458] sm:$0xff]
        %v439 = vld [vmem:[%s249 + $0x460] sm:$0xff]
        %v440 = vld [vmem:[%s249 + $0x468] sm:$0xff]
        %v441 = vld [vmem:[%s249 + $0x470] sm:$0xff]
        %v442 = vld [vmem:[%s249 + $0x478] sm:$0xff]
        %v443 = vld [vmem:[%s249 + $0x480] sm:$0xff]
        %v444 = vld [vmem:[%s249 + $0x488] sm:$0xff]
        %v445 = vld [vmem:[%s249 + $0x490] sm:$0xff]
        %v446 = vld [vmem:[%s249 + $0x498] sm:$0xff]
        %v447 = vld [vmem:[%s249 + $0x4a0] sm:$0xff]
        %v448 = vld [vmem:[%s249 + $0x4a8] sm:$0xff]
        %v449 = vld [vmem:[%s249 + $0x4b0] sm:$0xff]
        %v450 = vld [vmem:[%s249 + $0x4b8] sm:$0xff]
        %v451 = vld [vmem:[%s249 + $0x4c0] sm:$0xff]
        %v452 = vld [vmem:[%s249 + $0x4c8] sm:$0xff]
        %v453 = vld [vmem:[%s249 + $0x4d0] sm:$0xff]
        %v454 = vld [vmem:[%s249 + $0x4d8] sm:$0xff]
        %v455 = vld [vmem:[%s249 + $0x4e0] sm:$0xff]
        %v456 = vld [vmem:[%s249 + $0x4e8] sm:$0xff]
        %v457 = vld [vmem:[%s249 + $0x4f0] sm:$0xff]
        %v458 = vld [vmem:[%s249 + $0x4f8] sm:$0xff]
        %v459 = vld [vmem:[%s249 + $0x500] sm:$0xff]
        %v460 = vld [vmem:[%s249 + $0x508] sm:$0xff]
        %v461 = vld [vmem:[%s249 + $0x510] sm:$0xff]
        %v462 = vld [vmem:[%s249 + $0x518] sm:$0xff]
        %v463 = vld [vmem:[%s249 + $0x520] sm:$0xff]
        %v464 = vld [vmem:[%s249 + $0x528] sm:$0xff]
        %v465 = vld [vmem:[%s249 + $0x530] sm:$0xff]
        %v466 = vld [vmem:[%s249 + $0x538] sm:$0xff]
        %v467 = vld [vmem:[%s249 + $0x540] sm:$0xff]
        %v468 = vld [vmem:[%s249 + $0x548] sm:$0xff]
        %v469 = vld [vmem:[%s249 + $0x550] sm:$0xff]
        %v470 = vld [vmem:[%s249 + $0x558] sm:$0xff]
        %v471 = vld [vmem:[%s249 + $0x560] sm:$0xff]
        %v472 = vld [vmem:[%s249 + $0x568] sm:$0xff]
        %v473 = vld [vmem:[%s249 + $0x570] sm:$0xff]
        %v474 = vld [vmem:[%s249 + $0x578] sm:$0xff]
        %v475 = vld [vmem:[%s249 + $0x580] sm:$0xff]
        %v476 = vld [vmem:[%s249 + $0x588] sm:$0xff]
        %v477 = vld [vmem:[%s249 + $0x590] sm:$0xff]
        %v478 = vld [vmem:[%s249 + $0x598] sm:$0xff]
        %v479 = vld [vmem:[%s249 + $0x5a0] sm:$0xff]
        %v480 = vld [vmem:[%s249 + $0x5a8] sm:$0xff]
        %v481 = vld [vmem:[%s249 + $0x5b0] sm:$0xff]
        %v482 = vld [vmem:[%s249 + $0x5b8] sm:$0xff]
        %v483 = vld [vmem:[%s249 + $0x5c0] sm:$0xff]
        %v484 = vld [vmem:[%s249 + $0x5c8] sm:$0xff]
        %v485 = vld [vmem:[%s249 + $0x5d0] sm:$0xff]
        %v486 = vld [vmem:[%s249 + $0x5d8] sm:$0xff]
        %v487 = vld [vmem:[%s249 + $0x5e0] sm:$0xff]
        %v488 = vld [vmem:[%s249 + $0x5e8] sm:$0xff]
        %v489 = vld [vmem:[%s249 + $0x5f0] sm:$0xff]
        %v490 = vld [vmem:[%s249 + $0x5f8] sm:$0xff]
        %v491 = vld [vmem:[%s249 + $0x600] sm:$0xff]
        %v492 = vld [vmem:[%s249 + $0x608] sm:$0xff]
        %v493 = vld [vmem:[%s249 + $0x610] sm:$0xff]
        %v494 = vld [vmem:[%s249 + $0x618] sm:$0xff]
        %v495 = vld [vmem:[%s249 + $0x620] sm:$0xff]
        %v496 = vld [vmem:[%s249 + $0x628] sm:$0xff]
        %v497 = vld [vmem:[%s249 + $0x630] sm:$0xff]
        %v498 = vld [vmem:[%s249 + $0x638] sm:$0xff]
        %v499 = vld [vmem:[%s249 + $0x640] sm:$0xff]
        %v500 = vld [vmem:[%s249 + $0x648] sm:$0xff]
        %v501 = vld [vmem:[%s249 + $0x650] sm:$0xff]
        %v502 = vld [vmem:[%s249 + $0x658] sm:$0xff]
        %v503 = vld [vmem:[%s249 + $0x660] sm:$0xff]
        %v504 = vld [vmem:[%s249 + $0x668] sm:$0xff]
        %v505 = vld [vmem:[%s249 + $0x670] sm:$0xff]
        %v506 = vld [vmem:[%s249 + $0x678] sm:$0xff]
        %v507 = vld [vmem:[%s249 + $0x680] sm:$0xff]
        %v508 = vld [vmem:[%s249 + $0x688] sm:$0xff]
        %v509 = vld [vmem:[%s249 + $0x690] sm:$0xff]
        %v510 = vld [vmem:[%s249 + $0x698] sm:$0xff]
        %v511 = vld [vmem:[%s249 + $0x6a0] sm:$0xff]
        %v512 = vld [vmem:[%s249 + $0x6a8] sm:$0xff]
        %v513 = vld [vmem:[%s249 + $0x6b0] sm:$0xff]
        %v514 = vld [vmem:[%s249 + $0x6b8] sm:$0xff]
        %v515 = vld [vmem:[%s249 + $0x6c0] sm:$0xff]
        %v516 = vld [vmem:[%s249 + $0x6c8] sm:$0xff]
        %v517 = vld [vmem:[%s249 + $0x6d0] sm:$0xff]
        %v518 = vld [vmem:[%s249 + $0x6d8] sm:$0xff]
        %v519 = vld [vmem:[%s249 + $0x6e0] sm:$0xff]
        %v520 = vld [vmem:[%s249 + $0x6e8] sm:$0xff]
        %v521 = vld [vmem:[%s249 + $0x6f0] sm:$0xff]
        %v522 = vld [vmem:[%s249 + $0x6f8] sm:$0xff]
        %v523 = vld [vmem:[%s249 + $0x700] sm:$0xff]
        %v524 = vld [vmem:[%s249 + $0x708] sm:$0xff]
        %v525 = vld [vmem:[%s249 + $0x710] sm:$0xff]
        %v526 = vld [vmem:[%s249 + $0x718] sm:$0xff]
        %v527 = vld [vmem:[%s249 + $0x720] sm:$0xff]
        %v528 = vld [vmem:[%s249 + $0x728] sm:$0xff]
        %v529 = vld [vmem:[%s249 + $0x730] sm:$0xff]
        %v530 = vld [vmem:[%s249 + $0x738] sm:$0xff]
        %v531 = vld [vmem:[%s249 + $0x740] sm:$0xff]
        %v532 = vld [vmem:[%s249 + $0x748] sm:$0xff]
        %v533 = vld [vmem:[%s249 + $0x750] sm:$0xff]
        %v534 = vld [vmem:[%s249 + $0x758] sm:$0xff]
        %v535 = vld [vmem:[%s249 + $0x760] sm:$0xff]
        %v536 = vld [vmem:[%s249 + $0x768] sm:$0xff]
        %v537 = vld [vmem:[%s249 + $0x770] sm:$0xff]
        %v538 = vld [vmem:[%s249 + $0x778] sm:$0xff]
        %v539 = vld [vmem:[%s249 + $0x780] sm:$0xff]
        %v540 = vld [vmem:[%s249 + $0x788] sm:$0xff]
        %v541 = vld [vmem:[%s249 + $0x790] sm:$0xff]
        %v542 = vld [vmem:[%s249 + $0x798] sm:$0xff]
        %v543 = vld [vmem:[%s249 + $0x7a0] sm:$0xff]
        %v544 = vld [vmem:[%s249 + $0x7a8] sm:$0xff]
        %v545 = vld [vmem:[%s249 + $0x7b0] sm:$0xff]
        %v546 = vld [vmem:[%s249 + $0x7b8] sm:$0xff]
        %v547 = vld [vmem:[%s249 + $0x7c0] sm:$0xff]
        %v548 = vld [vmem:[%s249 + $0x7c8] sm:$0xff]
        %v549 = vld [vmem:[%s249 + $0x7d0] sm:$0xff]
        %v550 = vld [vmem:[%s249 + $0x7d8] sm:$0xff]
        %v551 = vld [vmem:[%s249 + $0x7e0] sm:$0xff]
        %v552 = vld [vmem:[%s249 + $0x7e8] sm:$0xff]
        %v553 = vld [vmem:[%s249 + $0x7f0] sm:$0xff]
        %v554 = vld [vmem:[%s249 + $0x7f8] sm:$0xff]
        %v555 = vld [vmem:[%s249 + $0x800] sm:$0xff]
        %v556 = vld [vmem:[%s249 + $0x808] sm:$0xff]
        %v557 = vld [vmem:[%s249 + $0x810] sm:$0xff]
        %v558 = vld [vmem:[%s249 + $0x818] sm:$0xff]
        %v559 = vld [vmem:[%s249 + $0x820] sm:$0xff]
        %v560 = vld [vmem:[%s249 + $0x828] sm:$0xff]
        %v561 = vld [vmem:[%s249 + $0x830] sm:$0xff]
        %v562 = vld [vmem:[%s249 + $0x838] sm:$0xff]
        %v563 = vld [vmem:[%s249 + $0x840] sm:$0xff]
        %v564 = vld [vmem:[%s249 + $0x848] sm:$0xff]
        %v565 = vld [vmem:[%s249 + $0x850] sm:$0xff]
        %v566 = vld [vmem:[%s249 + $0x858] sm:$0xff]
        %v567 = vld [vmem:[%s249 + $0x860] sm:$0xff]
        %v568 = vld [vmem:[%s249 + $0x868] sm:$0xff]
        %v569 = vld [vmem:[%s249 + $0x870] sm:$0xff]
        %v570 = vld [vmem:[%s249 + $0x878] sm:$0xff]
        %v571 = vld [vmem:[%s249 + $0x880] sm:$0xff]
        %v572 = vld [vmem:[%s249 + $0x888] sm:$0xff]
        %v573 = vld [vmem:[%s249 + $0x890] sm:$0xff]
        %v574 = vld [vmem:[%s249 + $0x898] sm:$0xff]
        %v575 = vld [vmem:[%s249 + $0x8a0] sm:$0xff]
        %v576 = vld [vmem:[%s249 + $0x8a8] sm:$0xff]
        %v577 = vld [vmem:[%s249 + $0x8b0] sm:$0xff]
        %v578 = vld [vmem:[%s249 + $0x8b8] sm:$0xff]
        %v579 = vld [vmem:[%s249 + $0x8c0] sm:$0xff]
        %v580 = vld [vmem:[%s249 + $0x8c8] sm:$0xff]
        %v581 = vld [vmem:[%s249 + $0x8d0] sm:$0xff]
        %v582 = vld [vmem:[%s249 + $0x8d8] sm:$0xff]
        %v583 = vld [vmem:[%s249 + $0x8e0] sm:$0xff]
        %v584 = vld [vmem:[%s249 + $0x8e8] sm:$0xff]
        %v585 = vld [vmem:[%s249 + $0x8f0] sm:$0xff]
        %v586 = vld [vmem:[%s249 + $0x8f8] sm:$0xff]
        %v587 = vld [vmem:[%s249 + $0x900] sm:$0xff]
        %v588 = vld [vmem:[%s249 + $0x908] sm:$0xff]
        %v589 = vld [vmem:[%s249 + $0x910] sm:$0xff]
        %v590 = vld [vmem:[%s249 + $0x918] sm:$0xff]
        %v591 = vld [vmem:[%s249 + $0x920] sm:$0xff]
        %v592 = vld [vmem:[%s249 + $0x928] sm:$0xff]
        %v593 = vld [vmem:[%s249 + $0x930] sm:$0xff]
        %v594 = vld [vmem:[%s249 + $0x938] sm:$0xff]
        %v595 = vld [vmem:[%s249 + $0x940] sm:$0xff]
        %v596 = vld [vmem:[%s249 + $0x948] sm:$0xff]
        %v597 = vld [vmem:[%s249 + $0x950] sm:$0xff]
        %v598 = vld [vmem:[%s249 + $0x958] sm:$0xff]
        %v599 = vld [vmem:[%s249 + $0x960] sm:$0xff]
        %v600 = vld [vmem:[%s249 + $0x968] sm:$0xff]
        %v601 = vld [vmem:[%s249 + $0x970] sm:$0xff]
        %v602 = vld [vmem:[%s249 + $0x978] sm:$0xff]
        %v603 = vpack.c.bf16 %v307, %v299
        %v604 = vpack.c.bf16 %v308, %v300
        %v605 = vpack.c.bf16 %v309, %v301
        %v606 = vpack.c.bf16 %v310, %v302
        %v607 = vpack.c.bf16 %v311, %v303
        %v608 = vpack.c.bf16 %v312, %v304
        %v609 = vpack.c.bf16 %v313, %v305
        %v610 = vpack.c.bf16 %v314, %v306
        %v611 = vpack.c.bf16 %v323, %v315
        %v612 = vpack.c.bf16 %v324, %v316
        %v613 = vpack.c.bf16 %v325, %v317
        %v614 = vpack.c.bf16 %v326, %v318
        %v615 = vpack.c.bf16 %v327, %v319
        %v616 = vpack.c.bf16 %v328, %v320
        %v617 = vpack.c.bf16 %v329, %v321
        %v618 = vpack.c.bf16 %v330, %v322
        %v619 = vpack.c.bf16 %v339, %v331
        %v620 = vpack.c.bf16 %v340, %v332
        %v621 = vpack.c.bf16 %v341, %v333
        %v622 = vpack.c.bf16 %v342, %v334
        %v623 = vpack.c.bf16 %v343, %v335
        %v624 = vpack.c.bf16 %v344, %v336
        %v625 = vpack.c.bf16 %v345, %v337
        %v626 = vpack.c.bf16 %v346, %v338
        %v627 = vpack.c.bf16 %v355, %v347
        %v628 = vpack.c.bf16 %v356, %v348
        %v629 = vpack.c.bf16 %v357, %v349
        %v630 = vpack.c.bf16 %v358, %v350
        %v631 = vpack.c.bf16 %v359, %v351
        %v632 = vpack.c.bf16 %v360, %v352
        %v633 = vpack.c.bf16 %v361, %v353
        %v634 = vpack.c.bf16 %v362, %v354
        %v635 = vpack.c.bf16 %v371, %v363
        %v636 = vpack.c.bf16 %v372, %v364
        %v637 = vpack.c.bf16 %v373, %v365
        %v638 = vpack.c.bf16 %v374, %v366
        %v639 = vpack.c.bf16 %v375, %v367
        %v640 = vpack.c.bf16 %v376, %v368
        %v641 = vpack.c.bf16 %v377, %v369
        %v642 = vpack.c.bf16 %v378, %v370
        %v643 = vpack.c.bf16 %v387, %v379
        %v644 = vpack.c.bf16 %v388, %v380
        %v645 = vpack.c.bf16 %v389, %v381
        %v646 = vpack.c.bf16 %v390, %v382
        %v647 = vpack.c.bf16 %v391, %v383
        %v648 = vpack.c.bf16 %v392, %v384
        %v649 = vpack.c.bf16 %v393, %v385
        %v650 = vpack.c.bf16 %v394, %v386
        %v651 = vpack.c.bf16 %v403, %v395
        %v652 = vpack.c.bf16 %v404, %v396
        %v653 = vpack.c.bf16 %v405, %v397
        %v654 = vpack.c.bf16 %v406, %v398
        %v655 = vpack.c.bf16 %v407, %v399
        %v656 = vpack.c.bf16 %v408, %v400
        %v657 = vpack.c.bf16 %v409, %v401
        %v658 = vpack.c.bf16 %v410, %v402
        %v659 = vpack.c.bf16 %v419, %v411
        %v660 = vpack.c.bf16 %v420, %v412
        %v661 = vpack.c.bf16 %v421, %v413
        %v662 = vpack.c.bf16 %v422, %v414
        %v663 = vpack.c.bf16 %v423, %v415
        %v664 = vpack.c.bf16 %v424, %v416
        %v665 = vpack.c.bf16 %v425, %v417
        %v666 = vpack.c.bf16 %v426, %v418
        %v667 = vpack.c.bf16 %v435, %v427
        %v668 = vpack.c.bf16 %v436, %v428
        %v669 = vpack.c.bf16 %v437, %v429
        %v670 = vpack.c.bf16 %v438, %v430
        %v671 = vpack.c.bf16 %v439, %v431
        %v672 = vpack.c.bf16 %v440, %v432
        %v673 = vpack.c.bf16 %v441, %v433
        %v674 = vpack.c.bf16 %v442, %v434
        %v675 = vpack.c.bf16 %v451, %v443
        %v676 = vpack.c.bf16 %v452, %v444
        %v677 = vpack.c.bf16 %v453, %v445
        %v678 = vpack.c.bf16 %v454, %v446
        %v679 = vpack.c.bf16 %v455, %v447
        %v680 = vpack.c.bf16 %v456, %v448
        %v681 = vpack.c.bf16 %v457, %v449
        %v682 = vpack.c.bf16 %v458, %v450
        %v683 = vpack.c.bf16 %v467, %v459
        %v684 = vpack.c.bf16 %v468, %v460
        %v685 = vpack.c.bf16 %v469, %v461
        %v686 = vpack.c.bf16 %v470, %v462
        %v687 = vpack.c.bf16 %v471, %v463
        %v688 = vpack.c.bf16 %v472, %v464
        %v689 = vpack.c.bf16 %v473, %v465
        %v690 = vpack.c.bf16 %v474, %v466
        %v691 = vpack.c.bf16 %v483, %v475
        %v692 = vpack.c.bf16 %v484, %v476
        %v693 = vpack.c.bf16 %v485, %v477
        %v694 = vpack.c.bf16 %v486, %v478
        %v695 = vpack.c.bf16 %v487, %v479
        %v696 = vpack.c.bf16 %v488, %v480
        %v697 = vpack.c.bf16 %v489, %v481
        %v698 = vpack.c.bf16 %v490, %v482
        %v699 = vpack.c.bf16 %v499, %v491
        %v700 = vpack.c.bf16 %v500, %v492
        %v701 = vpack.c.bf16 %v501, %v493
        %v702 = vpack.c.bf16 %v502, %v494
        %v703 = vpack.c.bf16 %v503, %v495
        %v704 = vpack.c.bf16 %v504, %v496
        %v705 = vpack.c.bf16 %v505, %v497
        %v706 = vpack.c.bf16 %v506, %v498
        %v707 = vpack.c.bf16 %v515, %v507
        %v708 = vpack.c.bf16 %v516, %v508
        %v709 = vpack.c.bf16 %v517, %v509
        %v710 = vpack.c.bf16 %v518, %v510
        %v711 = vpack.c.bf16 %v519, %v511
        %v712 = vpack.c.bf16 %v520, %v512
        %v713 = vpack.c.bf16 %v521, %v513
        %v714 = vpack.c.bf16 %v522, %v514
        %v715 = vpack.c.bf16 %v531, %v523
        %v716 = vpack.c.bf16 %v532, %v524
        %v717 = vpack.c.bf16 %v533, %v525
        %v718 = vpack.c.bf16 %v534, %v526
        %v719 = vpack.c.bf16 %v535, %v527
        %v720 = vpack.c.bf16 %v536, %v528
        %v721 = vpack.c.bf16 %v537, %v529
        %v722 = vpack.c.bf16 %v538, %v530
        %v723 = vpack.c.bf16 %v547, %v539
        %v724 = vpack.c.bf16 %v548, %v540
        %v725 = vpack.c.bf16 %v549, %v541
        %v726 = vpack.c.bf16 %v550, %v542
        %v727 = vpack.c.bf16 %v551, %v543
        %v728 = vpack.c.bf16 %v552, %v544
        %v729 = vpack.c.bf16 %v553, %v545
        %v730 = vpack.c.bf16 %v554, %v546
        %v731 = vpack.c.bf16 %v563, %v555
        %v732 = vpack.c.bf16 %v564, %v556
        %v733 = vpack.c.bf16 %v565, %v557
        %v734 = vpack.c.bf16 %v566, %v558
        %v735 = vpack.c.bf16 %v567, %v559
        %v736 = vpack.c.bf16 %v568, %v560
        %v737 = vpack.c.bf16 %v569, %v561
        %v738 = vpack.c.bf16 %v570, %v562
        %v739 = vpack.c.bf16 %v579, %v571
        %v740 = vpack.c.bf16 %v580, %v572
        %v741 = vpack.c.bf16 %v581, %v573
        %v742 = vpack.c.bf16 %v582, %v574
        %v743 = vpack.c.bf16 %v583, %v575
        %v744 = vpack.c.bf16 %v584, %v576
        %v745 = vpack.c.bf16 %v585, %v577
        %v746 = vpack.c.bf16 %v586, %v578
        %v747 = vpack.c.bf16 %v595, %v587
        %v748 = vpack.c.bf16 %v596, %v588
        %v749 = vpack.c.bf16 %v597, %v589
        %v750 = vpack.c.bf16 %v598, %v590
        %v751 = vpack.c.bf16 %v599, %v591
        %v752 = vpack.c.bf16 %v600, %v592
        %v753 = vpack.c.bf16 %v601, %v593
        %v754 = vpack.c.bf16 %v602, %v594
        %v755 = vld [vmem:[#allocation4] sm:$0xf]
        %v756 = vld [vmem:[#allocation4 + $0x4] sm:$0xf]
        %v757 = vld [vmem:[#allocation4 + $0x8] sm:$0xf]
        %v758 = vld [vmem:[#allocation4 + $0xc] sm:$0xf]
        %v759 = vld [vmem:[#allocation4 + $0x10] sm:$0xf]
        %v760 = vld [vmem:[#allocation4 + $0x14] sm:$0xf]
        %v761 = vld [vmem:[#allocation4 + $0x18] sm:$0xf]
        %v762 = vld [vmem:[#allocation4 + $0x1c] sm:$0xf]
        %v763 = vld [vmem:[#allocation4 + $0x20] sm:$0xf]
        %v764 = vld [vmem:[#allocation4 + $0x24] sm:$0xf]
        %v765 = vld [vmem:[#allocation4 + $0x28] sm:$0xf]
        %v766 = vld [vmem:[#allocation4 + $0x2c] sm:$0xf]
        %v767 = vld [vmem:[#allocation4 + $0x30] sm:$0xf]
        %v768 = vld [vmem:[#allocation4 + $0x34] sm:$0xf]
        %v769 = vld [vmem:[#allocation4 + $0x38] sm:$0xf]
        %v770 = vld [vmem:[#allocation4 + $0x3c] sm:$0xf]
        %v771 = vld [vmem:[#allocation4 + $0x40] sm:$0xf]
        %v772 = vld [vmem:[#allocation4 + $0x44] sm:$0xf]
        %v773 = vld [vmem:[#allocation4 + $0x48] sm:$0xf]
        %v774 = vld [vmem:[#allocation4 + $0x4c] sm:$0xf]
        %v775 = vld [vmem:[#allocation4 + $0x50] sm:$0xf]
        %v776 = vld [vmem:[#allocation4 + $0x54] sm:$0xf]
        %v777 = vld [vmem:[#allocation4 + $0x58] sm:$0xf]
        %v778 = vld [vmem:[#allocation4 + $0x5c] sm:$0xf]
        %v779 = vld [vmem:[#allocation4 + $0x60] sm:$0xf]
        %v780 = vld [vmem:[#allocation4 + $0x64] sm:$0xf]
        %v781 = vld [vmem:[#allocation4 + $0x68] sm:$0xf]
        %v782 = vld [vmem:[#allocation4 + $0x6c] sm:$0xf]
        %v783 = vld [vmem:[#allocation4 + $0x70] sm:$0xf]
        %v784 = vld [vmem:[#allocation4 + $0x74] sm:$0xf]
        %v785 = vld [vmem:[#allocation4 + $0x78] sm:$0xf]
        %v786 = vld [vmem:[#allocation4 + $0x7c] sm:$0xf]
        %v787 = vld [vmem:[#allocation4 + $0x80] sm:$0xf]
        %v788 = vld [vmem:[#allocation4 + $0x84] sm:$0xf]
        %v789 = vld [vmem:[#allocation4 + $0x88] sm:$0xf]
        %v790 = vld [vmem:[#allocation4 + $0x8c] sm:$0xf]
        %v791 = vld [vmem:[#allocation4 + $0x90] sm:$0xf]
        %v792 = vld [vmem:[#allocation4 + $0x94] sm:$0xf]
        %v793 = vld [vmem:[#allocation4 + $0x98] sm:$0xf]
        %v794 = vld [vmem:[#allocation4 + $0x9c] sm:$0xf]
        %v795 = vld [vmem:[#allocation4 + $0xa0] sm:$0xf]
        %v796 = vld [vmem:[#allocation4 + $0xa4] sm:$0xf]
        %v797 = vld [vmem:[#allocation4 + $0xa8] sm:$0xf]
        %v798 = vld [vmem:[#allocation4 + $0xac] sm:$0xf]
        %v799 = vld [vmem:[#allocation4 + $0xb0] sm:$0xf]
        %v800 = vld [vmem:[#allocation4 + $0xb4] sm:$0xf]
        %v801 = vld [vmem:[#allocation4 + $0xb8] sm:$0xf]
        %v802 = vld [vmem:[#allocation4 + $0xbc] sm:$0xf]
        %v803 = vld [vmem:[#allocation4 + $0xc0] sm:$0xf]
        %v804 = vld [vmem:[#allocation4 + $0xc4] sm:$0xf]
        %v805 = vld [vmem:[#allocation4 + $0xc8] sm:$0xf]
        %v806 = vld [vmem:[#allocation4 + $0xcc] sm:$0xf]
        %v807 = vld [vmem:[#allocation4 + $0xd0] sm:$0xf]
        %v808 = vld [vmem:[#allocation4 + $0xd4] sm:$0xf]
        %v809 = vld [vmem:[#allocation4 + $0xd8] sm:$0xf]
        %v810 = vld [vmem:[#allocation4 + $0xdc] sm:$0xf]
        %v811 = vld [vmem:[#allocation4 + $0xe0] sm:$0xf]
        %v812 = vld [vmem:[#allocation4 + $0xe4] sm:$0xf]
        %v813 = vld [vmem:[#allocation4 + $0xe8] sm:$0xf]
        %v814 = vld [vmem:[#allocation4 + $0xec] sm:$0xf]
        %v815 = vld [vmem:[#allocation4 + $0xf0] sm:$0xf]
        %v816 = vld [vmem:[#allocation4 + $0xf4] sm:$0xf]
        %v817 = vld [vmem:[#allocation4 + $0xf8] sm:$0xf]
        %v818 = vld [vmem:[#allocation4 + $0xfc] sm:$0xf]
        %v819 = vld [vmem:[#allocation4 + $0x100] sm:$0xf]
        %v820 = vld [vmem:[#allocation4 + $0x104] sm:$0xf]
        %v821 = vld [vmem:[#allocation4 + $0x108] sm:$0xf]
        %v822 = vld [vmem:[#allocation4 + $0x10c] sm:$0xf]
        %v823 = vld [vmem:[#allocation4 + $0x110] sm:$0xf]
        %v824 = vld [vmem:[#allocation4 + $0x114] sm:$0xf]
        %v825 = vld [vmem:[#allocation4 + $0x118] sm:$0xf]
        %v826 = vld [vmem:[#allocation4 + $0x11c] sm:$0xf]
        %v827 = vld [vmem:[#allocation4 + $0x120] sm:$0xf]
        %v828 = vld [vmem:[#allocation4 + $0x124] sm:$0xf]
        %v829 = vld [vmem:[#allocation4 + $0x128] sm:$0xf]
        %v830 = vld [vmem:[#allocation4 + $0x12c] sm:$0xf]
        %v831 = vld [vmem:[#allocation4 + $0x130] sm:$0xf]
        %v832 = vld [vmem:[#allocation4 + $0x134] sm:$0xf]
        %v833 = vld [vmem:[#allocation4 + $0x138] sm:$0xf]
        %v834 = vld [vmem:[#allocation4 + $0x13c] sm:$0xf]
        %v835 = vld [vmem:[#allocation4 + $0x140] sm:$0xf]
        %v836 = vld [vmem:[#allocation4 + $0x144] sm:$0xf]
        %v837 = vld [vmem:[#allocation4 + $0x148] sm:$0xf]
        %v838 = vld [vmem:[#allocation4 + $0x14c] sm:$0xf]
        %v839 = vld [vmem:[#allocation4 + $0x150] sm:$0xf]
        %v840 = vld [vmem:[#allocation4 + $0x154] sm:$0xf]
        %v841 = vld [vmem:[#allocation4 + $0x158] sm:$0xf]
        %v842 = vld [vmem:[#allocation4 + $0x15c] sm:$0xf]
        %v843 = vld [vmem:[#allocation4 + $0x160] sm:$0xf]
        %v844 = vld [vmem:[#allocation4 + $0x164] sm:$0xf]
        %v845 = vld [vmem:[#allocation4 + $0x168] sm:$0xf]
        %v846 = vld [vmem:[#allocation4 + $0x16c] sm:$0xf]
        %v847 = vld [vmem:[#allocation4 + $0x170] sm:$0xf]
        %v848 = vld [vmem:[#allocation4 + $0x174] sm:$0xf]
        %v849 = vld [vmem:[#allocation4 + $0x178] sm:$0xf]
        %v850 = vld [vmem:[#allocation4 + $0x17c] sm:$0xf]
        %v851 = vld [vmem:[#allocation4 + $0x180] sm:$0xf]
        %v852 = vld [vmem:[#allocation4 + $0x184] sm:$0xf]
        %v853 = vld [vmem:[#allocation4 + $0x188] sm:$0xf]
        %v854 = vld [vmem:[#allocation4 + $0x18c] sm:$0xf]
        %v855 = vld [vmem:[#allocation4 + $0x190] sm:$0xf]
        %v856 = vld [vmem:[#allocation4 + $0x194] sm:$0xf]
        %v857 = vld [vmem:[#allocation4 + $0x198] sm:$0xf]
        %v858 = vld [vmem:[#allocation4 + $0x19c] sm:$0xf]
        %v859 = vld [vmem:[#allocation4 + $0x1a0] sm:$0xf]
        %v860 = vld [vmem:[#allocation4 + $0x1a4] sm:$0xf]
        %v861 = vld [vmem:[#allocation4 + $0x1a8] sm:$0xf]
        %v862 = vld [vmem:[#allocation4 + $0x1ac] sm:$0xf]
        %v863 = vld [vmem:[#allocation4 + $0x1b0] sm:$0xf]
        %v864 = vld [vmem:[#allocation4 + $0x1b4] sm:$0xf]
        %v865 = vld [vmem:[#allocation4 + $0x1b8] sm:$0xf]
        %v866 = vld [vmem:[#allocation4 + $0x1bc] sm:$0xf]
        %v867 = vld [vmem:[#allocation4 + $0x1c0] sm:$0xf]
        %v868 = vld [vmem:[#allocation4 + $0x1c4] sm:$0xf]
        %v869 = vld [vmem:[#allocation4 + $0x1c8] sm:$0xf]
        %v870 = vld [vmem:[#allocation4 + $0x1cc] sm:$0xf]
        %v871 = vld [vmem:[#allocation4 + $0x1d0] sm:$0xf]
        %v872 = vld [vmem:[#allocation4 + $0x1d4] sm:$0xf]
        %v873 = vld [vmem:[#allocation4 + $0x1d8] sm:$0xf]
        %v874 = vld [vmem:[#allocation4 + $0x1dc] sm:$0xf]
        %v875 = vld [vmem:[#allocation4 + $0x1e0] sm:$0xf]
        %v876 = vld [vmem:[#allocation4 + $0x1e4] sm:$0xf]
        %v877 = vld [vmem:[#allocation4 + $0x1e8] sm:$0xf]
        %v878 = vld [vmem:[#allocation4 + $0x1ec] sm:$0xf]
        %v879 = vld [vmem:[#allocation4 + $0x1f0] sm:$0xf]
        %v880 = vld [vmem:[#allocation4 + $0x1f4] sm:$0xf]
        %v881 = vld [vmem:[#allocation4 + $0x1f8] sm:$0xf]
        %v882 = vld [vmem:[#allocation4 + $0x1fc] sm:$0xf]
        %v883 = vld [vmem:[#allocation6] sm:$0x1]
        %v885 = vlaneseq
        %v886 = vshrl.u32 %v885, 7
        %v887 = vsub.s32 0, %v886
        %v888 = vrot.slane %v883, %v887
        %v1018 = vunpack.c.l.b16 %v755
        %v1019 = vunpack.c.l.b16 %v756
        %v1020 = vunpack.c.l.b16 %v757
        %v1021 = vunpack.c.l.b16 %v758
        %v1022 = vunpack.c.l.b16 %v759
        %v1023 = vunpack.c.l.b16 %v760
        %v1024 = vunpack.c.l.b16 %v761
        %v1025 = vunpack.c.l.b16 %v762
        %v1026 = vunpack.c.l.b16 %v763
        %v1027 = vunpack.c.l.b16 %v764
        %v1028 = vunpack.c.l.b16 %v765
        %v1029 = vunpack.c.l.b16 %v766
        %v1030 = vunpack.c.l.b16 %v767
        %v1031 = vunpack.c.l.b16 %v768
        %v1032 = vunpack.c.l.b16 %v769
        %v1033 = vunpack.c.l.b16 %v770
        %v1034 = vunpack.c.l.b16 %v771
        %v1035 = vunpack.c.l.b16 %v772
        %v1036 = vunpack.c.l.b16 %v773
        %v1037 = vunpack.c.l.b16 %v774
        %v1038 = vunpack.c.l.b16 %v775
        %v1039 = vunpack.c.l.b16 %v776
        %v1040 = vunpack.c.l.b16 %v777
        %v1041 = vunpack.c.l.b16 %v778
        %v1042 = vunpack.c.l.b16 %v779
        %v1043 = vunpack.c.l.b16 %v780
        %v1044 = vunpack.c.l.b16 %v781
        %v1045 = vunpack.c.l.b16 %v782
        %v1046 = vunpack.c.l.b16 %v783
        %v1047 = vunpack.c.l.b16 %v784
        %v1048 = vunpack.c.l.b16 %v785
        %v1049 = vunpack.c.l.b16 %v786
        %v1050 = vunpack.c.l.b16 %v787
        %v1051 = vunpack.c.l.b16 %v788
        %v1052 = vunpack.c.l.b16 %v789
        %v1053 = vunpack.c.l.b16 %v790
        %v1054 = vunpack.c.l.b16 %v791
        %v1055 = vunpack.c.l.b16 %v792
        %v1056 = vunpack.c.l.b16 %v793
        %v1057 = vunpack.c.l.b16 %v794
        %v1058 = vunpack.c.l.b16 %v795
        %v1059 = vunpack.c.l.b16 %v796
        %v1060 = vunpack.c.l.b16 %v797
        %v1061 = vunpack.c.l.b16 %v798
        %v1062 = vunpack.c.l.b16 %v799
        %v1063 = vunpack.c.l.b16 %v800
        %v1064 = vunpack.c.l.b16 %v801
        %v1065 = vunpack.c.l.b16 %v802
        %v1066 = vunpack.c.l.b16 %v803
        %v1067 = vunpack.c.l.b16 %v804
        %v1068 = vunpack.c.l.b16 %v805
        %v1069 = vunpack.c.l.b16 %v806
        %v1070 = vunpack.c.l.b16 %v807
        %v1071 = vunpack.c.l.b16 %v808
        %v1072 = vunpack.c.l.b16 %v809
        %v1073 = vunpack.c.l.b16 %v810
        %v1074 = vunpack.c.l.b16 %v811
        %v1075 = vunpack.c.l.b16 %v812
        %v1076 = vunpack.c.l.b16 %v813
        %v1077 = vunpack.c.l.b16 %v814
        %v1078 = vunpack.c.l.b16 %v815
        %v1079 = vunpack.c.l.b16 %v816
        %v1080 = vunpack.c.l.b16 %v817
        %v1081 = vunpack.c.l.b16 %v818
        %v1082 = vunpack.c.l.b16 %v819
        %v1083 = vunpack.c.l.b16 %v820
        %v1084 = vunpack.c.l.b16 %v821
        %v1085 = vunpack.c.l.b16 %v822
        %v1086 = vunpack.c.l.b16 %v823
        %v1087 = vunpack.c.l.b16 %v824
        %v1088 = vunpack.c.l.b16 %v825
        %v1089 = vunpack.c.l.b16 %v826
        %v1090 = vunpack.c.l.b16 %v827
        %v1091 = vunpack.c.l.b16 %v828
        %v1092 = vunpack.c.l.b16 %v829
        %v1093 = vunpack.c.l.b16 %v830
        %v1094 = vunpack.c.l.b16 %v831
        %v1095 = vunpack.c.l.b16 %v832
        %v1096 = vunpack.c.l.b16 %v833
        %v1097 = vunpack.c.l.b16 %v834
        %v1098 = vunpack.c.l.b16 %v835
        %v1099 = vunpack.c.l.b16 %v836
        %v1100 = vunpack.c.l.b16 %v837
        %v1101 = vunpack.c.l.b16 %v838
        %v1102 = vunpack.c.l.b16 %v839
        %v1103 = vunpack.c.l.b16 %v840
        %v1104 = vunpack.c.l.b16 %v841
        %v1105 = vunpack.c.l.b16 %v842
        %v1106 = vunpack.c.l.b16 %v843
        %v1107 = vunpack.c.l.b16 %v844
        %v1108 = vunpack.c.l.b16 %v845
        %v1109 = vunpack.c.l.b16 %v846
        %v1110 = vunpack.c.l.b16 %v847
        %v1111 = vunpack.c.l.b16 %v848
        %v1112 = vunpack.c.l.b16 %v849
        %v1113 = vunpack.c.l.b16 %v850
        %v1114 = vunpack.c.l.b16 %v851
        %v1115 = vunpack.c.l.b16 %v852
        %v1116 = vunpack.c.l.b16 %v853
        %v1117 = vunpack.c.l.b16 %v854
        %v1118 = vunpack.c.l.b16 %v855
        %v1119 = vunpack.c.l.b16 %v856
        %v1120 = vunpack.c.l.b16 %v857
        %v1121 = vunpack.c.l.b16 %v858
        %v1122 = vunpack.c.l.b16 %v859
        %v1123 = vunpack.c.l.b16 %v860
        %v1124 = vunpack.c.l.b16 %v861
        %v1125 = vunpack.c.l.b16 %v862
        %v1126 = vunpack.c.l.b16 %v863
        %v1127 = vunpack.c.l.b16 %v864
        %v1128 = vunpack.c.l.b16 %v865
        %v1129 = vunpack.c.l.b16 %v866
        %v1130 = vunpack.c.l.b16 %v867
        %v1131 = vunpack.c.l.b16 %v868
        %v1132 = vunpack.c.l.b16 %v869
        %v1133 = vunpack.c.l.b16 %v870
        %v1134 = vunpack.c.l.b16 %v871
        %v1135 = vunpack.c.l.b16 %v872
        %v1136 = vunpack.c.l.b16 %v873
        %v1137 = vunpack.c.l.b16 %v874
        %v1138 = vunpack.c.l.b16 %v875
        %v1139 = vunpack.c.l.b16 %v876
        %v1140 = vunpack.c.l.b16 %v877
        %v1141 = vunpack.c.l.b16 %v878
        %v1142 = vunpack.c.l.b16 %v879
        %v1143 = vunpack.c.l.b16 %v880
        %v1144 = vunpack.c.l.b16 %v881
        %v1145 = vunpack.c.l.b16 %v882
        %v1146 = vpack.c.b16 %v1019, %v1018
        %v1147 = vpack.c.b16 %v1021, %v1020
        %v1148 = vpack.c.b16 %v1023, %v1022
        %v1149 = vpack.c.b16 %v1025, %v1024
        %v1150 = vpack.c.b16 %v1027, %v1026
        %v1151 = vpack.c.b16 %v1029, %v1028
        %v1152 = vpack.c.b16 %v1031, %v1030
        %v1153 = vpack.c.b16 %v1033, %v1032
        %v1154 = vpack.c.b16 %v1035, %v1034
        %v1155 = vpack.c.b16 %v1037, %v1036
        %v1156 = vpack.c.b16 %v1039, %v1038
        %v1157 = vpack.c.b16 %v1041, %v1040
        %v1158 = vpack.c.b16 %v1043, %v1042
        %v1159 = vpack.c.b16 %v1045, %v1044
        %v1160 = vpack.c.b16 %v1047, %v1046
        %v1161 = vpack.c.b16 %v1049, %v1048
        %v1162 = vpack.c.b16 %v1051, %v1050
        %v1163 = vpack.c.b16 %v1053, %v1052
        %v1164 = vpack.c.b16 %v1055, %v1054
        %v1165 = vpack.c.b16 %v1057, %v1056
        %v1166 = vpack.c.b16 %v1059, %v1058
        %v1167 = vpack.c.b16 %v1061, %v1060
        %v1168 = vpack.c.b16 %v1063, %v1062
        %v1169 = vpack.c.b16 %v1065, %v1064
        %v1170 = vpack.c.b16 %v1067, %v1066
        %v1171 = vpack.c.b16 %v1069, %v1068
        %v1172 = vpack.c.b16 %v1071, %v1070
        %v1173 = vpack.c.b16 %v1073, %v1072
        %v1174 = vpack.c.b16 %v1075, %v1074
        %v1175 = vpack.c.b16 %v1077, %v1076
        %v1176 = vpack.c.b16 %v1079, %v1078
        %v1177 = vpack.c.b16 %v1081, %v1080
        %v1178 = vpack.c.b16 %v1083, %v1082
        %v1179 = vpack.c.b16 %v1085, %v1084
        %v1180 = vpack.c.b16 %v1087, %v1086
        %v1181 = vpack.c.b16 %v1089, %v1088
        %v1182 = vpack.c.b16 %v1091, %v1090
        %v1183 = vpack.c.b16 %v1093, %v1092
        %v1184 = vpack.c.b16 %v1095, %v1094
        %v1185 = vpack.c.b16 %v1097, %v1096
        %v1186 = vpack.c.b16 %v1099, %v1098
        %v1187 = vpack.c.b16 %v1101, %v1100
        %v1188 = vpack.c.b16 %v1103, %v1102
        %v1189 = vpack.c.b16 %v1105, %v1104
        %v1190 = vpack.c.b16 %v1107, %v1106
        %v1191 = vpack.c.b16 %v1109, %v1108
        %v1192 = vpack.c.b16 %v1111, %v1110
        %v1193 = vpack.c.b16 %v1113, %v1112
        %v1194 = vpack.c.b16 %v1115, %v1114
        %v1195 = vpack.c.b16 %v1117, %v1116
        %v1196 = vpack.c.b16 %v1119, %v1118
        %v1197 = vpack.c.b16 %v1121, %v1120
        %v1198 = vpack.c.b16 %v1123, %v1122
        %v1199 = vpack.c.b16 %v1125, %v1124
        %v1200 = vpack.c.b16 %v1127, %v1126
        %v1201 = vpack.c.b16 %v1129, %v1128
        %v1202 = vpack.c.b16 %v1131, %v1130
        %v1203 = vpack.c.b16 %v1133, %v1132
        %v1204 = vpack.c.b16 %v1135, %v1134
        %v1205 = vpack.c.b16 %v1137, %v1136
        %v1206 = vpack.c.b16 %v1139, %v1138
        %v1207 = vpack.c.b16 %v1141, %v1140
        %v1208 = vpack.c.b16 %v1143, %v1142
        %v1209 = vpack.c.b16 %v1145, %v1144
        %1274 = vmatprep.subr.bf16.mxu0 0
        %1275 = vmatpush1.bf16.msra.mxu0 %v1153
        %1276 = vmatprep.subr.bf16.mxu0 0
        %1277 = vmatpush1.bf16.msra.mxu0 %v1152
        %1278 = vmatprep.subr.bf16.mxu0 0
        %1279 = vmatpush1.bf16.msra.mxu0 %v1151
        %1280 = vmatprep.subr.bf16.mxu0 0
        %1281 = vmatpush1.bf16.msra.mxu0 %v1150
        %1282 = vmatprep.subr.bf16.mxu0 0
        %1283 = vmatpush1.bf16.msra.mxu0 %v1149
        %1284 = vmatprep.subr.bf16.mxu0 0
        %1285 = vmatpush1.bf16.msra.mxu0 %v1148
        %1286 = vmatprep.subr.bf16.mxu0 0
        %1287 = vmatpush1.bf16.msra.mxu0 %v1147
        %1288 = vmatprep.subr.bf16.mxu0 0
        %1289 = vmatpush1.bf16.msra.mxu0 %v1146
        %1290 = vmatprep.subr.bf16.mxu0 0
        %1291 = vmatpush2.bf16.msra.mxu0 %v1161
        %1292 = vmatprep.subr.bf16.mxu0 0
        %1293 = vmatpush2.bf16.msra.mxu0 %v1160
        %1294 = vmatprep.subr.bf16.mxu0 0
        %1295 = vmatpush2.bf16.msra.mxu0 %v1159
        %1296 = vmatprep.subr.bf16.mxu0 0
        %1297 = vmatpush2.bf16.msra.mxu0 %v1158
        %1298 = vmatprep.subr.bf16.mxu0 0
        %1299 = vmatpush2.bf16.msra.mxu0 %v1157
        %1300 = vmatprep.subr.bf16.mxu0 0
        %1301 = vmatpush2.bf16.msra.mxu0 %v1156
        %1302 = vmatprep.subr.bf16.mxu0 0
        %1303 = vmatpush2.bf16.msra.mxu0 %v1155
        %1304 = vmatprep.subr.bf16.mxu0 0
        %1305 = vmatpush2.bf16.msra.mxu0 %v1154
        %1306 = vmatprep.mubr.bf16.mxu0 %v604
        %1307 = vmatmul.mubr.bf16.gmra.mxu0 %v603
        %v1308 = vpop.f32.mrf.mxu0
        %v1309 = vadd.f32 %v888, %v1308
        %v1310 = vpop.f32.mrf.mxu0
        %v1311 = vpop.f32.mrf.mxu0
        %v1312 = vadd.f32 %v888, %v1311
        %v1313 = vpop.f32.mrf.mxu0
        %1314 = vmatprep.mubr.bf16.mxu0 %v612
        %1315 = vmatmul.mubr.bf16.gmra.mxu0 %v611
        %v1316 = vpop.f32.mrf.mxu0
        %v1317 = vadd.f32 %v888, %v1316
        %v1318 = vpop.f32.mrf.mxu0
        %v1319 = vpop.f32.mrf.mxu0
        %v1320 = vadd.f32 %v888, %v1319
        %v1321 = vpop.f32.mrf.mxu0
        %1322 = vmatprep.mubr.bf16.mxu0 %v620
        %1323 = vmatmul.mubr.bf16.gmra.mxu0 %v619
        %v1324 = vpop.f32.mrf.mxu0
        %v1325 = vadd.f32 %v888, %v1324
        %v1326 = vpop.f32.mrf.mxu0
        %v1327 = vpop.f32.mrf.mxu0
        %v1328 = vadd.f32 %v888, %v1327
        %v1329 = vpop.f32.mrf.mxu0
        %1330 = vmatprep.mubr.bf16.mxu0 %v628
        %1331 = vmatmul.mubr.bf16.gmra.mxu0 %v627
        %v1332 = vpop.f32.mrf.mxu0
        %v1333 = vadd.f32 %v888, %v1332
        %v1334 = vpop.f32.mrf.mxu0
        %v1335 = vpop.f32.mrf.mxu0
        %v1336 = vadd.f32 %v888, %v1335
        %v1337 = vpop.f32.mrf.mxu0
        %1338 = vmatprep.mubr.bf16.mxu0 %v636
        %1339 = vmatmul.mubr.bf16.gmra.mxu0 %v635
        %v1340 = vpop.f32.mrf.mxu0
        %v1341 = vadd.f32 %v888, %v1340
        %v1342 = vpop.f32.mrf.mxu0
        %v1343 = vpop.f32.mrf.mxu0
        %v1344 = vadd.f32 %v888, %v1343
        %v1345 = vpop.f32.mrf.mxu0
        %1346 = vmatprep.mubr.bf16.mxu0 %v644
        %1347 = vmatmul.mubr.bf16.gmra.mxu0 %v643
        %v1348 = vpop.f32.mrf.mxu0
        %v1349 = vadd.f32 %v888, %v1348
        %v1350 = vpop.f32.mrf.mxu0
        %v1351 = vpop.f32.mrf.mxu0
        %v1352 = vadd.f32 %v888, %v1351
        %v1353 = vpop.f32.mrf.mxu0
        %1354 = vmatprep.mubr.bf16.mxu0 %v652
        %1355 = vmatmul.mubr.bf16.gmra.mxu0 %v651
        %v1356 = vpop.f32.mrf.mxu0
        %v1357 = vadd.f32 %v888, %v1356
        %v1358 = vpop.f32.mrf.mxu0
        %v1359 = vpop.f32.mrf.mxu0
        %v1360 = vadd.f32 %v888, %v1359
        %v1361 = vpop.f32.mrf.mxu0
        %1362 = vmatprep.mubr.bf16.mxu0 %v660
        %1363 = vmatmul.mubr.bf16.gmra.mxu0 %v659
        %v1364 = vpop.f32.mrf.mxu0
        %v1365 = vadd.f32 %v888, %v1364
        %v1366 = vpop.f32.mrf.mxu0
        %v1367 = vpop.f32.mrf.mxu0
        %v1368 = vadd.f32 %v888, %v1367
        %v1369 = vpop.f32.mrf.mxu0
        %1370 = vmatprep.mubr.bf16.mxu0 %v668
        %1371 = vmatmul.mubr.bf16.gmra.mxu0 %v667
        %v1372 = vpop.f32.mrf.mxu0
        %v1373 = vadd.f32 %v888, %v1372
        %v1374 = vpop.f32.mrf.mxu0
        %v1375 = vpop.f32.mrf.mxu0
        %v1376 = vadd.f32 %v888, %v1375
        %v1377 = vpop.f32.mrf.mxu0
        %1378 = vmatprep.mubr.bf16.mxu0 %v676
        %1379 = vmatmul.mubr.bf16.gmra.mxu0 %v675
        %v1380 = vpop.f32.mrf.mxu0
        %v1381 = vadd.f32 %v888, %v1380
        %v1382 = vpop.f32.mrf.mxu0
        %v1383 = vpop.f32.mrf.mxu0
        %v1384 = vadd.f32 %v888, %v1383
        %v1385 = vpop.f32.mrf.mxu0
        %1386 = vmatprep.mubr.bf16.mxu0 %v684
        %1387 = vmatmul.mubr.bf16.gmra.mxu0 %v683
        %v1388 = vpop.f32.mrf.mxu0
        %v1389 = vadd.f32 %v888, %v1388
        %v1390 = vpop.f32.mrf.mxu0
        %v1391 = vpop.f32.mrf.mxu0
        %v1392 = vadd.f32 %v888, %v1391
        %v1393 = vpop.f32.mrf.mxu0
        %1394 = vmatprep.mubr.bf16.mxu0 %v692
        %1395 = vmatmul.mubr.bf16.gmra.mxu0 %v691
        %v1396 = vpop.f32.mrf.mxu0
        %v1397 = vadd.f32 %v888, %v1396
        %v1398 = vpop.f32.mrf.mxu0
        %v1399 = vpop.f32.mrf.mxu0
        %v1400 = vadd.f32 %v888, %v1399
        %v1401 = vpop.f32.mrf.mxu0
        %1402 = vmatprep.mubr.bf16.mxu0 %v700
        %1403 = vmatmul.mubr.bf16.gmra.mxu0 %v699
        %v1404 = vpop.f32.mrf.mxu0
        %v1405 = vadd.f32 %v888, %v1404
        %v1406 = vpop.f32.mrf.mxu0
        %v1407 = vpop.f32.mrf.mxu0
        %v1408 = vadd.f32 %v888, %v1407
        %v1409 = vpop.f32.mrf.mxu0
        %1410 = vmatprep.mubr.bf16.mxu0 %v708
        %1411 = vmatmul.mubr.bf16.gmra.mxu0 %v707
        %v1412 = vpop.f32.mrf.mxu0
        %v1413 = vadd.f32 %v888, %v1412
        %v1414 = vpop.f32.mrf.mxu0
        %v1415 = vpop.f32.mrf.mxu0
        %v1416 = vadd.f32 %v888, %v1415
        %v1417 = vpop.f32.mrf.mxu0
        %1418 = vmatprep.mubr.bf16.mxu0 %v716
        %1419 = vmatmul.mubr.bf16.gmra.mxu0 %v715
        %v1420 = vpop.f32.mrf.mxu0
        %v1421 = vadd.f32 %v888, %v1420
        %v1422 = vpop.f32.mrf.mxu0
        %v1423 = vpop.f32.mrf.mxu0
        %v1424 = vadd.f32 %v888, %v1423
        %v1425 = vpop.f32.mrf.mxu0
        %1426 = vmatprep.mubr.bf16.mxu0 %v724
        %1427 = vmatmul.mubr.bf16.gmra.mxu0 %v723
        %v1428 = vpop.f32.mrf.mxu0
        %v1429 = vadd.f32 %v888, %v1428
        %v1430 = vpop.f32.mrf.mxu0
        %v1431 = vpop.f32.mrf.mxu0
        %v1432 = vadd.f32 %v888, %v1431
        %v1433 = vpop.f32.mrf.mxu0
        %1434 = vmatprep.mubr.bf16.mxu0 %v732
        %1435 = vmatmul.mubr.bf16.gmra.mxu0 %v731
        %v1436 = vpop.f32.mrf.mxu0
        %v1437 = vadd.f32 %v888, %v1436
        %v1438 = vpop.f32.mrf.mxu0
        %v1439 = vpop.f32.mrf.mxu0
        %v1440 = vadd.f32 %v888, %v1439
        %v1441 = vpop.f32.mrf.mxu0
        %1442 = vmatprep.mubr.bf16.mxu0 %v740
        %1443 = vmatmul.mubr.bf16.gmra.mxu0 %v739
        %v1444 = vpop.f32.mrf.mxu0
        %v1445 = vadd.f32 %v888, %v1444
        %v1446 = vpop.f32.mrf.mxu0
        %v1447 = vpop.f32.mrf.mxu0
        %v1448 = vadd.f32 %v888, %v1447
        %v1449 = vpop.f32.mrf.mxu0
        %1450 = vmatprep.mubr.bf16.mxu0 %v748
        %1451 = vmatmul.mubr.bf16.gmra.mxu0 %v747
        %v1452 = vpop.f32.mrf.mxu0
        %v1453 = vadd.f32 %v888, %v1452
        %v1454 = vpop.f32.mrf.mxu0
        %v1455 = vpop.f32.mrf.mxu0
        %v1456 = vadd.f32 %v888, %v1455
        %v1457 = vpop.f32.mrf.mxu0
        %1458 = vdwg.mxu0
        %1459 = vmatprep.subr.bf16.mxu0 0
        %1460 = vmatpush1.bf16.msra.mxu0 %v1169
        %1461 = vmatprep.subr.bf16.mxu0 0
        %1462 = vmatpush1.bf16.msra.mxu0 %v1168
        %1463 = vmatprep.subr.bf16.mxu0 0
        %1464 = vmatpush1.bf16.msra.mxu0 %v1167
        %1465 = vmatprep.subr.bf16.mxu0 0
        %1466 = vmatpush1.bf16.msra.mxu0 %v1166
        %1467 = vmatprep.subr.bf16.mxu0 0
        %1468 = vmatpush1.bf16.msra.mxu0 %v1165
        %1469 = vmatprep.subr.bf16.mxu0 0
        %1470 = vmatpush1.bf16.msra.mxu0 %v1164
        %1471 = vmatprep.subr.bf16.mxu0 0
        %1472 = vmatpush1.bf16.msra.mxu0 %v1163
        %1473 = vmatprep.subr.bf16.mxu0 0
        %1474 = vmatpush1.bf16.msra.mxu0 %v1162
        %1475 = vmatprep.subr.bf16.mxu0 0
        %1476 = vmatpush2.bf16.msra.mxu0 %v1177
        %1477 = vmatprep.subr.bf16.mxu0 0
        %1478 = vmatpush2.bf16.msra.mxu0 %v1176
        %1479 = vmatprep.subr.bf16.mxu0 0
        %1480 = vmatpush2.bf16.msra.mxu0 %v1175
        %1481 = vmatprep.subr.bf16.mxu0 0
        %1482 = vmatpush2.bf16.msra.mxu0 %v1174
        %1483 = vmatprep.subr.bf16.mxu0 0
        %1484 = vmatpush2.bf16.msra.mxu0 %v1173
        %1485 = vmatprep.subr.bf16.mxu0 0
        %1486 = vmatpush2.bf16.msra.mxu0 %v1172
        %1487 = vmatprep.subr.bf16.mxu0 0
        %1488 = vmatpush2.bf16.msra.mxu0 %v1171
        %1489 = vmatprep.subr.bf16.mxu0 0
        %1490 = vmatpush2.bf16.msra.mxu0 %v1170
        %1491 = vmatprep.mubr.bf16.mxu0 %v606
        %1492 = vmatmul.mubr.bf16.gmra.mxu0 %v605
        %v1493 = vpop.f32.mrf.mxu0
        %v1494 = vadd.f32 %v1309, %v1493
        %v1495 = vpop.f32.mrf.mxu0
        %v1496 = vpop.f32.mrf.mxu0
        %v1497 = vadd.f32 %v1312, %v1496
        %v1498 = vpop.f32.mrf.mxu0
        %1499 = vmatprep.mubr.bf16.mxu0 %v614
        %1500 = vmatmul.mubr.bf16.gmra.mxu0 %v613
        %v1501 = vpop.f32.mrf.mxu0
        %v1502 = vadd.f32 %v1317, %v1501
        %v1503 = vpop.f32.mrf.mxu0
        %v1504 = vpop.f32.mrf.mxu0
        %v1505 = vadd.f32 %v1320, %v1504
        %v1506 = vpop.f32.mrf.mxu0
        %1507 = vmatprep.mubr.bf16.mxu0 %v622
        %1508 = vmatmul.mubr.bf16.gmra.mxu0 %v621
        %v1509 = vpop.f32.mrf.mxu0
        %v1510 = vadd.f32 %v1325, %v1509
        %v1511 = vpop.f32.mrf.mxu0
        %v1512 = vpop.f32.mrf.mxu0
        %v1513 = vadd.f32 %v1328, %v1512
        %v1514 = vpop.f32.mrf.mxu0
        %1515 = vmatprep.mubr.bf16.mxu0 %v630
        %1516 = vmatmul.mubr.bf16.gmra.mxu0 %v629
        %v1517 = vpop.f32.mrf.mxu0
        %v1518 = vadd.f32 %v1333, %v1517
        %v1519 = vpop.f32.mrf.mxu0
        %v1520 = vpop.f32.mrf.mxu0
        %v1521 = vadd.f32 %v1336, %v1520
        %v1522 = vpop.f32.mrf.mxu0
        %1523 = vmatprep.mubr.bf16.mxu0 %v638
        %1524 = vmatmul.mubr.bf16.gmra.mxu0 %v637
        %v1525 = vpop.f32.mrf.mxu0
        %v1526 = vadd.f32 %v1341, %v1525
        %v1527 = vpop.f32.mrf.mxu0
        %v1528 = vpop.f32.mrf.mxu0
        %v1529 = vadd.f32 %v1344, %v1528
        %v1530 = vpop.f32.mrf.mxu0
        %1531 = vmatprep.mubr.bf16.mxu0 %v646
        %1532 = vmatmul.mubr.bf16.gmra.mxu0 %v645
        %v1533 = vpop.f32.mrf.mxu0
        %v1534 = vadd.f32 %v1349, %v1533
        %v1535 = vpop.f32.mrf.mxu0
        %v1536 = vpop.f32.mrf.mxu0
        %v1537 = vadd.f32 %v1352, %v1536
        %v1538 = vpop.f32.mrf.mxu0
        %1539 = vmatprep.mubr.bf16.mxu0 %v654
        %1540 = vmatmul.mubr.bf16.gmra.mxu0 %v653
        %v1541 = vpop.f32.mrf.mxu0
        %v1542 = vadd.f32 %v1357, %v1541
        %v1543 = vpop.f32.mrf.mxu0
        %v1544 = vpop.f32.mrf.mxu0
        %v1545 = vadd.f32 %v1360, %v1544
        %v1546 = vpop.f32.mrf.mxu0
        %1547 = vmatprep.mubr.bf16.mxu0 %v662
        %1548 = vmatmul.mubr.bf16.gmra.mxu0 %v661
        %v1549 = vpop.f32.mrf.mxu0
        %v1550 = vadd.f32 %v1365, %v1549
        %v1551 = vpop.f32.mrf.mxu0
        %v1552 = vpop.f32.mrf.mxu0
        %v1553 = vadd.f32 %v1368, %v1552
        %v1554 = vpop.f32.mrf.mxu0
        %1555 = vmatprep.mubr.bf16.mxu0 %v670
        %1556 = vmatmul.mubr.bf16.gmra.mxu0 %v669
        %v1557 = vpop.f32.mrf.mxu0
        %v1558 = vadd.f32 %v1373, %v1557
        %v1559 = vpop.f32.mrf.mxu0
        %v1560 = vpop.f32.mrf.mxu0
        %v1561 = vadd.f32 %v1376, %v1560
        %v1562 = vpop.f32.mrf.mxu0
        %1563 = vmatprep.mubr.bf16.mxu0 %v678
        %1564 = vmatmul.mubr.bf16.gmra.mxu0 %v677
        %v1565 = vpop.f32.mrf.mxu0
        %v1566 = vadd.f32 %v1381, %v1565
        %v1567 = vpop.f32.mrf.mxu0
        %v1568 = vpop.f32.mrf.mxu0
        %v1569 = vadd.f32 %v1384, %v1568
        %v1570 = vpop.f32.mrf.mxu0
        %1571 = vmatprep.mubr.bf16.mxu0 %v686
        %1572 = vmatmul.mubr.bf16.gmra.mxu0 %v685
        %v1573 = vpop.f32.mrf.mxu0
        %v1574 = vadd.f32 %v1389, %v1573
        %v1575 = vpop.f32.mrf.mxu0
        %v1576 = vpop.f32.mrf.mxu0
        %v1577 = vadd.f32 %v1392, %v1576
        %v1578 = vpop.f32.mrf.mxu0
        %1579 = vmatprep.mubr.bf16.mxu0 %v694
        %1580 = vmatmul.mubr.bf16.gmra.mxu0 %v693
        %v1581 = vpop.f32.mrf.mxu0
        %v1582 = vadd.f32 %v1397, %v1581
        %v1583 = vpop.f32.mrf.mxu0
        %v1584 = vpop.f32.mrf.mxu0
        %v1585 = vadd.f32 %v1400, %v1584
        %v1586 = vpop.f32.mrf.mxu0
        %1587 = vmatprep.mubr.bf16.mxu0 %v702
        %1588 = vmatmul.mubr.bf16.gmra.mxu0 %v701
        %v1589 = vpop.f32.mrf.mxu0
        %v1590 = vadd.f32 %v1405, %v1589
        %v1591 = vpop.f32.mrf.mxu0
        %v1592 = vpop.f32.mrf.mxu0
        %v1593 = vadd.f32 %v1408, %v1592
        %v1594 = vpop.f32.mrf.mxu0
        %1595 = vmatprep.mubr.bf16.mxu0 %v710
        %1596 = vmatmul.mubr.bf16.gmra.mxu0 %v709
        %v1597 = vpop.f32.mrf.mxu0
        %v1598 = vadd.f32 %v1413, %v1597
        %v1599 = vpop.f32.mrf.mxu0
        %v1600 = vpop.f32.mrf.mxu0
        %v1601 = vadd.f32 %v1416, %v1600
        %v1602 = vpop.f32.mrf.mxu0
        %1603 = vmatprep.mubr.bf16.mxu0 %v718
        %1604 = vmatmul.mubr.bf16.gmra.mxu0 %v717
        %v1605 = vpop.f32.mrf.mxu0
        %v1606 = vadd.f32 %v1421, %v1605
        %v1607 = vpop.f32.mrf.mxu0
        %v1608 = vpop.f32.mrf.mxu0
        %v1609 = vadd.f32 %v1424, %v1608
        %v1610 = vpop.f32.mrf.mxu0
        %1611 = vmatprep.mubr.bf16.mxu0 %v726
        %1612 = vmatmul.mubr.bf16.gmra.mxu0 %v725
        %v1613 = vpop.f32.mrf.mxu0
        %v1614 = vadd.f32 %v1429, %v1613
        %v1615 = vpop.f32.mrf.mxu0
        %v1616 = vpop.f32.mrf.mxu0
        %v1617 = vadd.f32 %v1432, %v1616
        %v1618 = vpop.f32.mrf.mxu0
        %1619 = vmatprep.mubr.bf16.mxu0 %v734
        %1620 = vmatmul.mubr.bf16.gmra.mxu0 %v733
        %v1621 = vpop.f32.mrf.mxu0
        %v1622 = vadd.f32 %v1437, %v1621
        %v1623 = vpop.f32.mrf.mxu0
        %v1624 = vpop.f32.mrf.mxu0
        %v1625 = vadd.f32 %v1440, %v1624
        %v1626 = vpop.f32.mrf.mxu0
        %1627 = vmatprep.mubr.bf16.mxu0 %v742
        %1628 = vmatmul.mubr.bf16.gmra.mxu0 %v741
        %v1629 = vpop.f32.mrf.mxu0
        %v1630 = vadd.f32 %v1445, %v1629
        %v1631 = vpop.f32.mrf.mxu0
        %v1632 = vpop.f32.mrf.mxu0
        %v1633 = vadd.f32 %v1448, %v1632
        %v1634 = vpop.f32.mrf.mxu0
        %1635 = vmatprep.mubr.bf16.mxu0 %v750
        %1636 = vmatmul.mubr.bf16.gmra.mxu0 %v749
        %v1637 = vpop.f32.mrf.mxu0
        %v1638 = vadd.f32 %v1453, %v1637
        %v1639 = vpop.f32.mrf.mxu0
        %v1640 = vpop.f32.mrf.mxu0
        %v1641 = vadd.f32 %v1456, %v1640
        %v1642 = vpop.f32.mrf.mxu0
        %1643 = vdwg.mxu0
        %1644 = vmatprep.subr.bf16.mxu0 0
        %1645 = vmatpush1.bf16.msra.mxu0 %v1185
        %1646 = vmatprep.subr.bf16.mxu0 0
        %1647 = vmatpush1.bf16.msra.mxu0 %v1184
        %1648 = vmatprep.subr.bf16.mxu0 0
        %1649 = vmatpush1.bf16.msra.mxu0 %v1183
        %1650 = vmatprep.subr.bf16.mxu0 0
        %1651 = vmatpush1.bf16.msra.mxu0 %v1182
        %1652 = vmatprep.subr.bf16.mxu0 0
        %1653 = vmatpush1.bf16.msra.mxu0 %v1181
        %1654 = vmatprep.subr.bf16.mxu0 0
        %1655 = vmatpush1.bf16.msra.mxu0 %v1180
        %1656 = vmatprep.subr.bf16.mxu0 0
        %1657 = vmatpush1.bf16.msra.mxu0 %v1179
        %1658 = vmatprep.subr.bf16.mxu0 0
        %1659 = vmatpush1.bf16.msra.mxu0 %v1178
        %1660 = vmatprep.subr.bf16.mxu0 0
        %1661 = vmatpush2.bf16.msra.mxu0 %v1193
        %1662 = vmatprep.subr.bf16.mxu0 0
        %1663 = vmatpush2.bf16.msra.mxu0 %v1192
        %1664 = vmatprep.subr.bf16.mxu0 0
        %1665 = vmatpush2.bf16.msra.mxu0 %v1191
        %1666 = vmatprep.subr.bf16.mxu0 0
        %1667 = vmatpush2.bf16.msra.mxu0 %v1190
        %1668 = vmatprep.subr.bf16.mxu0 0
        %1669 = vmatpush2.bf16.msra.mxu0 %v1189
        %1670 = vmatprep.subr.bf16.mxu0 0
        %1671 = vmatpush2.bf16.msra.mxu0 %v1188
        %1672 = vmatprep.subr.bf16.mxu0 0
        %1673 = vmatpush2.bf16.msra.mxu0 %v1187
        %1674 = vmatprep.subr.bf16.mxu0 0
        %1675 = vmatpush2.bf16.msra.mxu0 %v1186
        %1676 = vmatprep.mubr.bf16.mxu0 %v608
        %1677 = vmatmul.mubr.bf16.gmra.mxu0 %v607
        %v1678 = vpop.f32.mrf.mxu0
        %v1679 = vadd.f32 %v1494, %v1678
        %v1680 = vpop.f32.mrf.mxu0
        %v1681 = vpop.f32.mrf.mxu0
        %v1682 = vadd.f32 %v1497, %v1681
        %v1683 = vpop.f32.mrf.mxu0
        %1684 = vmatprep.mubr.bf16.mxu0 %v616
        %1685 = vmatmul.mubr.bf16.gmra.mxu0 %v615
        %v1686 = vpop.f32.mrf.mxu0
        %v1687 = vadd.f32 %v1502, %v1686
        %v1688 = vpop.f32.mrf.mxu0
        %v1689 = vpop.f32.mrf.mxu0
        %v1690 = vadd.f32 %v1505, %v1689
        %v1691 = vpop.f32.mrf.mxu0
        %1692 = vmatprep.mubr.bf16.mxu0 %v624
        %1693 = vmatmul.mubr.bf16.gmra.mxu0 %v623
        %v1694 = vpop.f32.mrf.mxu0
        %v1695 = vadd.f32 %v1510, %v1694
        %v1696 = vpop.f32.mrf.mxu0
        %v1697 = vpop.f32.mrf.mxu0
        %v1698 = vadd.f32 %v1513, %v1697
        %v1699 = vpop.f32.mrf.mxu0
        %1700 = vmatprep.mubr.bf16.mxu0 %v632
        %1701 = vmatmul.mubr.bf16.gmra.mxu0 %v631
        %v1702 = vpop.f32.mrf.mxu0
        %v1703 = vadd.f32 %v1518, %v1702
        %v1704 = vpop.f32.mrf.mxu0
        %v1705 = vpop.f32.mrf.mxu0
        %v1706 = vadd.f32 %v1521, %v1705
        %v1707 = vpop.f32.mrf.mxu0
        %1708 = vmatprep.mubr.bf16.mxu0 %v640
        %1709 = vmatmul.mubr.bf16.gmra.mxu0 %v639
        %v1710 = vpop.f32.mrf.mxu0
        %v1711 = vadd.f32 %v1526, %v1710
        %v1712 = vpop.f32.mrf.mxu0
        %v1713 = vpop.f32.mrf.mxu0
        %v1714 = vadd.f32 %v1529, %v1713
        %v1715 = vpop.f32.mrf.mxu0
        %1716 = vmatprep.mubr.bf16.mxu0 %v648
        %1717 = vmatmul.mubr.bf16.gmra.mxu0 %v647
        %v1718 = vpop.f32.mrf.mxu0
        %v1719 = vadd.f32 %v1534, %v1718
        %v1720 = vpop.f32.mrf.mxu0
        %v1721 = vpop.f32.mrf.mxu0
        %v1722 = vadd.f32 %v1537, %v1721
        %v1723 = vpop.f32.mrf.mxu0
        %1724 = vmatprep.mubr.bf16.mxu0 %v656
        %1725 = vmatmul.mubr.bf16.gmra.mxu0 %v655
        %v1726 = vpop.f32.mrf.mxu0
        %v1727 = vadd.f32 %v1542, %v1726
        %v1728 = vpop.f32.mrf.mxu0
        %v1729 = vpop.f32.mrf.mxu0
        %v1730 = vadd.f32 %v1545, %v1729
        %v1731 = vpop.f32.mrf.mxu0
        %1732 = vmatprep.mubr.bf16.mxu0 %v664
        %1733 = vmatmul.mubr.bf16.gmra.mxu0 %v663
        %v1734 = vpop.f32.mrf.mxu0
        %v1735 = vadd.f32 %v1550, %v1734
        %v1736 = vpop.f32.mrf.mxu0
        %v1737 = vpop.f32.mrf.mxu0
        %v1738 = vadd.f32 %v1553, %v1737
        %v1739 = vpop.f32.mrf.mxu0
        %1740 = vmatprep.mubr.bf16.mxu0 %v672
        %1741 = vmatmul.mubr.bf16.gmra.mxu0 %v671
        %v1742 = vpop.f32.mrf.mxu0
        %v1743 = vadd.f32 %v1558, %v1742
        %v1744 = vpop.f32.mrf.mxu0
        %v1745 = vpop.f32.mrf.mxu0
        %v1746 = vadd.f32 %v1561, %v1745
        %v1747 = vpop.f32.mrf.mxu0
        %1748 = vmatprep.mubr.bf16.mxu0 %v680
        %1749 = vmatmul.mubr.bf16.gmra.mxu0 %v679
        %v1750 = vpop.f32.mrf.mxu0
        %v1751 = vadd.f32 %v1566, %v1750
        %v1752 = vpop.f32.mrf.mxu0
        %v1753 = vpop.f32.mrf.mxu0
        %v1754 = vadd.f32 %v1569, %v1753
        %v1755 = vpop.f32.mrf.mxu0
        %1756 = vmatprep.mubr.bf16.mxu0 %v688
        %1757 = vmatmul.mubr.bf16.gmra.mxu0 %v687
        %v1758 = vpop.f32.mrf.mxu0
        %v1759 = vadd.f32 %v1574, %v1758
        %v1760 = vpop.f32.mrf.mxu0
        %v1761 = vpop.f32.mrf.mxu0
        %v1762 = vadd.f32 %v1577, %v1761
        %v1763 = vpop.f32.mrf.mxu0
        %1764 = vmatprep.mubr.bf16.mxu0 %v696
        %1765 = vmatmul.mubr.bf16.gmra.mxu0 %v695
        %v1766 = vpop.f32.mrf.mxu0
        %v1767 = vadd.f32 %v1582, %v1766
        %v1768 = vpop.f32.mrf.mxu0
        %v1769 = vpop.f32.mrf.mxu0
        %v1770 = vadd.f32 %v1585, %v1769
        %v1771 = vpop.f32.mrf.mxu0
        %1772 = vmatprep.mubr.bf16.mxu0 %v704
        %1773 = vmatmul.mubr.bf16.gmra.mxu0 %v703
        %v1774 = vpop.f32.mrf.mxu0
        %v1775 = vadd.f32 %v1590, %v1774
        %v1776 = vpop.f32.mrf.mxu0
        %v1777 = vpop.f32.mrf.mxu0
        %v1778 = vadd.f32 %v1593, %v1777
        %v1779 = vpop.f32.mrf.mxu0
        %1780 = vmatprep.mubr.bf16.mxu0 %v712
        %1781 = vmatmul.mubr.bf16.gmra.mxu0 %v711
        %v1782 = vpop.f32.mrf.mxu0
        %v1783 = vadd.f32 %v1598, %v1782
        %v1784 = vpop.f32.mrf.mxu0
        %v1785 = vpop.f32.mrf.mxu0
        %v1786 = vadd.f32 %v1601, %v1785
        %v1787 = vpop.f32.mrf.mxu0
        %1788 = vmatprep.mubr.bf16.mxu0 %v720
        %1789 = vmatmul.mubr.bf16.gmra.mxu0 %v719
        %v1790 = vpop.f32.mrf.mxu0
        %v1791 = vadd.f32 %v1606, %v1790
        %v1792 = vpop.f32.mrf.mxu0
        %v1793 = vpop.f32.mrf.mxu0
        %v1794 = vadd.f32 %v1609, %v1793
        %v1795 = vpop.f32.mrf.mxu0
        %1796 = vmatprep.mubr.bf16.mxu0 %v728
        %1797 = vmatmul.mubr.bf16.gmra.mxu0 %v727
        %v1798 = vpop.f32.mrf.mxu0
        %v1799 = vadd.f32 %v1614, %v1798
        %v1800 = vpop.f32.mrf.mxu0
        %v1801 = vpop.f32.mrf.mxu0
        %v1802 = vadd.f32 %v1617, %v1801
        %v1803 = vpop.f32.mrf.mxu0
        %1804 = vmatprep.mubr.bf16.mxu0 %v736
        %1805 = vmatmul.mubr.bf16.gmra.mxu0 %v735
        %v1806 = vpop.f32.mrf.mxu0
        %v1807 = vadd.f32 %v1622, %v1806
        %v1808 = vpop.f32.mrf.mxu0
        %v1809 = vpop.f32.mrf.mxu0
        %v1810 = vadd.f32 %v1625, %v1809
        %v1811 = vpop.f32.mrf.mxu0
        %1812 = vmatprep.mubr.bf16.mxu0 %v744
        %1813 = vmatmul.mubr.bf16.gmra.mxu0 %v743
        %v1814 = vpop.f32.mrf.mxu0
        %v1815 = vadd.f32 %v1630, %v1814
        %v1816 = vpop.f32.mrf.mxu0
        %v1817 = vpop.f32.mrf.mxu0
        %v1818 = vadd.f32 %v1633, %v1817
        %v1819 = vpop.f32.mrf.mxu0
        %1820 = vmatprep.mubr.bf16.mxu0 %v752
        %1821 = vmatmul.mubr.bf16.gmra.mxu0 %v751
        %v1822 = vpop.f32.mrf.mxu0
        %v1823 = vadd.f32 %v1638, %v1822
        %v1824 = vpop.f32.mrf.mxu0
        %v1825 = vpop.f32.mrf.mxu0
        %v1826 = vadd.f32 %v1641, %v1825
        %v1827 = vpop.f32.mrf.mxu0
        %1828 = vdwg.mxu0
        %1829 = vmatprep.subr.bf16.mxu0 0
        %1830 = vmatpush1.bf16.msra.mxu0 %v1201
        %1831 = vmatprep.subr.bf16.mxu0 0
        %1832 = vmatpush1.bf16.msra.mxu0 %v1200
        %1833 = vmatprep.subr.bf16.mxu0 0
        %1834 = vmatpush1.bf16.msra.mxu0 %v1199
        %1835 = vmatprep.subr.bf16.mxu0 0
        %1836 = vmatpush1.bf16.msra.mxu0 %v1198
        %1837 = vmatprep.subr.bf16.mxu0 0
        %1838 = vmatpush1.bf16.msra.mxu0 %v1197
        %1839 = vmatprep.subr.bf16.mxu0 0
        %1840 = vmatpush1.bf16.msra.mxu0 %v1196
        %1841 = vmatprep.subr.bf16.mxu0 0
        %1842 = vmatpush1.bf16.msra.mxu0 %v1195
        %1843 = vmatprep.subr.bf16.mxu0 0
        %1844 = vmatpush1.bf16.msra.mxu0 %v1194
        %1845 = vmatprep.subr.bf16.mxu0 0
        %1846 = vmatpush2.bf16.msra.mxu0 %v1209
        %1847 = vmatprep.subr.bf16.mxu0 0
        %1848 = vmatpush2.bf16.msra.mxu0 %v1208
        %1849 = vmatprep.subr.bf16.mxu0 0
        %1850 = vmatpush2.bf16.msra.mxu0 %v1207
        %1851 = vmatprep.subr.bf16.mxu0 0
        %1852 = vmatpush2.bf16.msra.mxu0 %v1206
        %1853 = vmatprep.subr.bf16.mxu0 0
        %1854 = vmatpush2.bf16.msra.mxu0 %v1205
        %1855 = vmatprep.subr.bf16.mxu0 0
        %1856 = vmatpush2.bf16.msra.mxu0 %v1204
        %1857 = vmatprep.subr.bf16.mxu0 0
        %1858 = vmatpush2.bf16.msra.mxu0 %v1203
        %1859 = vmatprep.subr.bf16.mxu0 0
        %1860 = vmatpush2.bf16.msra.mxu0 %v1202
        %1861 = vmatprep.mubr.bf16.mxu0 %v610
        %1862 = vmatmul.mubr.bf16.gmra.mxu0 %v609
        %v1863 = vpop.f32.mrf.mxu0
        %v1864 = vadd.f32 %v1679, %v1863
        %v1865 = vpop.f32.mrf.mxu0
        %v1866 = vpop.f32.mrf.mxu0
        %v1867 = vadd.f32 %v1682, %v1866
        %v1868 = vpop.f32.mrf.mxu0
        %1869 = vmatprep.mubr.bf16.mxu0 %v618
        %1870 = vmatmul.mubr.bf16.gmra.mxu0 %v617
        %v1871 = vpop.f32.mrf.mxu0
        %v1872 = vadd.f32 %v1687, %v1871
        %v1873 = vpop.f32.mrf.mxu0
        %v1874 = vpop.f32.mrf.mxu0
        %v1875 = vadd.f32 %v1690, %v1874
        %v1876 = vpop.f32.mrf.mxu0
        %1877 = vmatprep.mubr.bf16.mxu0 %v626
        %1878 = vmatmul.mubr.bf16.gmra.mxu0 %v625
        %v1879 = vpop.f32.mrf.mxu0
        %v1880 = vadd.f32 %v1695, %v1879
        %v1881 = vpop.f32.mrf.mxu0
        %v1882 = vpop.f32.mrf.mxu0
        %v1883 = vadd.f32 %v1698, %v1882
        %v1884 = vpop.f32.mrf.mxu0
        %1885 = vmatprep.mubr.bf16.mxu0 %v634
        %1886 = vmatmul.mubr.bf16.gmra.mxu0 %v633
        %v1887 = vpop.f32.mrf.mxu0
        %v1888 = vadd.f32 %v1703, %v1887
        %v1889 = vpop.f32.mrf.mxu0
        %v1890 = vpop.f32.mrf.mxu0
        %v1891 = vadd.f32 %v1706, %v1890
        %v1892 = vpop.f32.mrf.mxu0
        %1893 = vmatprep.mubr.bf16.mxu0 %v642
        %1894 = vmatmul.mubr.bf16.gmra.mxu0 %v641
        %v1895 = vpop.f32.mrf.mxu0
        %v1896 = vadd.f32 %v1711, %v1895
        %v1897 = vpop.f32.mrf.mxu0
        %v1898 = vpop.f32.mrf.mxu0
        %v1899 = vadd.f32 %v1714, %v1898
        %v1900 = vpop.f32.mrf.mxu0
        %1901 = vmatprep.mubr.bf16.mxu0 %v650
        %1902 = vmatmul.mubr.bf16.gmra.mxu0 %v649
        %v1903 = vpop.f32.mrf.mxu0
        %v1904 = vadd.f32 %v1719, %v1903
        %v1905 = vpop.f32.mrf.mxu0
        %v1906 = vpop.f32.mrf.mxu0
        %v1907 = vadd.f32 %v1722, %v1906
        %v1908 = vpop.f32.mrf.mxu0
        %1909 = vmatprep.mubr.bf16.mxu0 %v658
        %1910 = vmatmul.mubr.bf16.gmra.mxu0 %v657
        %v1911 = vpop.f32.mrf.mxu0
        %v1912 = vadd.f32 %v1727, %v1911
        %v1913 = vpop.f32.mrf.mxu0
        %v1914 = vpop.f32.mrf.mxu0
        %v1915 = vadd.f32 %v1730, %v1914
        %v1916 = vpop.f32.mrf.mxu0
        %1917 = vmatprep.mubr.bf16.mxu0 %v666
        %1918 = vmatmul.mubr.bf16.gmra.mxu0 %v665
        %v1919 = vpop.f32.mrf.mxu0
        %v1920 = vadd.f32 %v1735, %v1919
        %v1921 = vpop.f32.mrf.mxu0
        %v1922 = vpop.f32.mrf.mxu0
        %v1923 = vadd.f32 %v1738, %v1922
        %v1924 = vpop.f32.mrf.mxu0
        %1925 = vmatprep.mubr.bf16.mxu0 %v674
        %1926 = vmatmul.mubr.bf16.gmra.mxu0 %v673
        %v1927 = vpop.f32.mrf.mxu0
        %v1928 = vadd.f32 %v1743, %v1927
        %v1929 = vpop.f32.mrf.mxu0
        %v1930 = vpop.f32.mrf.mxu0
        %v1931 = vadd.f32 %v1746, %v1930
        %v1932 = vpop.f32.mrf.mxu0
        %1933 = vmatprep.mubr.bf16.mxu0 %v682
        %1934 = vmatmul.mubr.bf16.gmra.mxu0 %v681
        %v1935 = vpop.f32.mrf.mxu0
        %v1936 = vadd.f32 %v1751, %v1935
        %v1937 = vpop.f32.mrf.mxu0
        %v1938 = vpop.f32.mrf.mxu0
        %v1939 = vadd.f32 %v1754, %v1938
        %v1940 = vpop.f32.mrf.mxu0
        %1941 = vmatprep.mubr.bf16.mxu0 %v690
        %1942 = vmatmul.mubr.bf16.gmra.mxu0 %v689
        %v1943 = vpop.f32.mrf.mxu0
        %v1944 = vadd.f32 %v1759, %v1943
        %v1945 = vpop.f32.mrf.mxu0
        %v1946 = vpop.f32.mrf.mxu0
        %v1947 = vadd.f32 %v1762, %v1946
        %v1948 = vpop.f32.mrf.mxu0
        %1949 = vmatprep.mubr.bf16.mxu0 %v698
        %1950 = vmatmul.mubr.bf16.gmra.mxu0 %v697
        %v1951 = vpop.f32.mrf.mxu0
        %v1952 = vadd.f32 %v1767, %v1951
        %v1953 = vpop.f32.mrf.mxu0
        %v1954 = vpop.f32.mrf.mxu0
        %v1955 = vadd.f32 %v1770, %v1954
        %v1956 = vpop.f32.mrf.mxu0
        %1957 = vmatprep.mubr.bf16.mxu0 %v706
        %1958 = vmatmul.mubr.bf16.gmra.mxu0 %v705
        %v1959 = vpop.f32.mrf.mxu0
        %v1960 = vadd.f32 %v1775, %v1959
        %v1961 = vpop.f32.mrf.mxu0
        %v1962 = vpop.f32.mrf.mxu0
        %v1963 = vadd.f32 %v1778, %v1962
        %v1964 = vpop.f32.mrf.mxu0
        %1965 = vmatprep.mubr.bf16.mxu0 %v714
        %1966 = vmatmul.mubr.bf16.gmra.mxu0 %v713
        %v1967 = vpop.f32.mrf.mxu0
        %v1968 = vadd.f32 %v1783, %v1967
        %v1969 = vpop.f32.mrf.mxu0
        %v1970 = vpop.f32.mrf.mxu0
        %v1971 = vadd.f32 %v1786, %v1970
        %v1972 = vpop.f32.mrf.mxu0
        %1973 = vmatprep.mubr.bf16.mxu0 %v722
        %1974 = vmatmul.mubr.bf16.gmra.mxu0 %v721
        %v1975 = vpop.f32.mrf.mxu0
        %v1976 = vadd.f32 %v1791, %v1975
        %v1977 = vpop.f32.mrf.mxu0
        %v1978 = vpop.f32.mrf.mxu0
        %v1979 = vadd.f32 %v1794, %v1978
        %v1980 = vpop.f32.mrf.mxu0
        %1981 = vmatprep.mubr.bf16.mxu0 %v730
        %1982 = vmatmul.mubr.bf16.gmra.mxu0 %v729
        %v1983 = vpop.f32.mrf.mxu0
        %v1984 = vadd.f32 %v1799, %v1983
        %v1985 = vpop.f32.mrf.mxu0
        %v1986 = vpop.f32.mrf.mxu0
        %v1987 = vadd.f32 %v1802, %v1986
        %v1988 = vpop.f32.mrf.mxu0
        %1989 = vmatprep.mubr.bf16.mxu0 %v738
        %1990 = vmatmul.mubr.bf16.gmra.mxu0 %v737
        %v1991 = vpop.f32.mrf.mxu0
        %v1992 = vadd.f32 %v1807, %v1991
        %v1993 = vpop.f32.mrf.mxu0
        %v1994 = vpop.f32.mrf.mxu0
        %v1995 = vadd.f32 %v1810, %v1994
        %v1996 = vpop.f32.mrf.mxu0
        %1997 = vmatprep.mubr.bf16.mxu0 %v746
        %1998 = vmatmul.mubr.bf16.gmra.mxu0 %v745
        %v1999 = vpop.f32.mrf.mxu0
        %v2000 = vadd.f32 %v1815, %v1999
        %v2001 = vpop.f32.mrf.mxu0
        %v2002 = vpop.f32.mrf.mxu0
        %v2003 = vadd.f32 %v1818, %v2002
        %v2004 = vpop.f32.mrf.mxu0
        %2005 = vmatprep.mubr.bf16.mxu0 %v754
        %2006 = vmatmul.mubr.bf16.gmra.mxu0 %v753
        %v2007 = vpop.f32.mrf.mxu0
        %v2008 = vadd.f32 %v1823, %v2007
        %v2009 = vpop.f32.mrf.mxu0
        %v2010 = vpop.f32.mrf.mxu0
        %v2011 = vadd.f32 %v1826, %v2010
        %v2012 = vpop.f32.mrf.mxu0
        %2013 = vdwg.mxu0
        %v2014 = vmax.f32 %v1864, 0.0
        %v2015 = vmax.f32 %v1867, 0.0
        %v2016 = vmax.f32 %v1872, 0.0
        %v2017 = vmax.f32 %v1875, 0.0
        %v2018 = vmax.f32 %v1880, 0.0
        %v2019 = vmax.f32 %v1883, 0.0
        %v2020 = vmax.f32 %v1888, 0.0
        %v2021 = vmax.f32 %v1891, 0.0
        %v2022 = vmax.f32 %v1896, 0.0
        %v2023 = vmax.f32 %v1899, 0.0
        %v2024 = vmax.f32 %v1904, 0.0
        %v2025 = vmax.f32 %v1907, 0.0
        %v2026 = vmax.f32 %v1912, 0.0
        %v2027 = vmax.f32 %v1915, 0.0
        %v2028 = vmax.f32 %v1920, 0.0
        %v2029 = vmax.f32 %v1923, 0.0
        %v2030 = vmax.f32 %v1928, 0.0
        %v2031 = vmax.f32 %v1931, 0.0
        %v2032 = vmax.f32 %v1936, 0.0
        %v2033 = vmax.f32 %v1939, 0.0
        %v2034 = vmax.f32 %v1944, 0.0
        %v2035 = vmax.f32 %v1947, 0.0
        %v2036 = vmax.f32 %v1952, 0.0
        %v2037 = vmax.f32 %v1955, 0.0
        %v2038 = vmax.f32 %v1960, 0.0
        %v2039 = vmax.f32 %v1963, 0.0
        %v2040 = vmax.f32 %v1968, 0.0
        %v2041 = vmax.f32 %v1971, 0.0
        %v2042 = vmax.f32 %v1976, 0.0
        %v2043 = vmax.f32 %v1979, 0.0
        %v2044 = vmax.f32 %v1984, 0.0
        %v2045 = vmax.f32 %v1987, 0.0
        %v2046 = vmax.f32 %v1992, 0.0
        %v2047 = vmax.f32 %v1995, 0.0
        %v2048 = vmax.f32 %v2000, 0.0
        %v2049 = vmax.f32 %v2003, 0.0
        %v2050 = vmax.f32 %v2008, 0.0
        %v2051 = vmax.f32 %v2011, 0.0
        %v2052 = vpack.c.bf16 %v2015, %v2014
        %v2053 = vpack.c.bf16 %v2017, %v2016
        %v2054 = vpack.c.bf16 %v2019, %v2018
        %v2055 = vpack.c.bf16 %v2021, %v2020
        %v2056 = vpack.c.bf16 %v2023, %v2022
        %v2057 = vpack.c.bf16 %v2025, %v2024
        %v2058 = vpack.c.bf16 %v2027, %v2026
        %v2059 = vpack.c.bf16 %v2029, %v2028
        %v2060 = vpack.c.bf16 %v2031, %v2030
        %v2061 = vpack.c.bf16 %v2033, %v2032
        %v2062 = vpack.c.bf16 %v2035, %v2034
        %v2063 = vpack.c.bf16 %v2037, %v2036
        %v2064 = vpack.c.bf16 %v2039, %v2038
        %v2065 = vpack.c.bf16 %v2041, %v2040
        %v2066 = vpack.c.bf16 %v2043, %v2042
        %v2067 = vpack.c.bf16 %v2045, %v2044
        %v2068 = vpack.c.bf16 %v2047, %v2046
        %v2069 = vpack.c.bf16 %v2049, %v2048
        %v2070 = vpack.c.bf16 %v2051, %v2050
        %v2071 = vld [vmem:[%s3] sm:$0xf]
        %v2072 = vld [vmem:[%s3 + $0x4] sm:$0xf]
        %v2073 = vld [vmem:[%s3 + $0x8] sm:$0xf]
        %v2074 = vld [vmem:[%s3 + $0xc] sm:$0xf]
        %v2075 = vld [vmem:[%s3 + $0x10] sm:$0xf]
        %v2076 = vld [vmem:[%s3 + $0x14] sm:$0xf]
        %v2077 = vld [vmem:[%s3 + $0x18] sm:$0xf]
        %v2078 = vld [vmem:[%s3 + $0x1c] sm:$0xf]
        %v2079 = vld [vmem:[%s3 + $0x20] sm:$0xf]
        %v2080 = vld [vmem:[%s3 + $0x24] sm:$0xf]
        %v2081 = vld [vmem:[%s3 + $0x28] sm:$0xf]
        %v2082 = vld [vmem:[%s3 + $0x2c] sm:$0xf]
        %v2083 = vld [vmem:[%s3 + $0x30] sm:$0xf]
        %v2084 = vld [vmem:[%s3 + $0x34] sm:$0xf]
        %v2085 = vld [vmem:[%s3 + $0x38] sm:$0xf]
        %v2086 = vld [vmem:[%s3 + $0x3c] sm:$0xf]
        %v2087 = vld [vmem:[#allocation7] sm:$0x1]
        %v2089 = vlaneseq
        %v2090 = vshrl.u32 %v2089, 7
        %v2091 = vsub.s32 0, %v2090
        %v2092 = vrot.slane %v2087, %v2091
        %v2110 = vunpack.c.l.b16 %v2071
        %v2111 = vunpack.c.l.b16 %v2072
        %v2112 = vunpack.c.l.b16 %v2073
        %v2113 = vunpack.c.l.b16 %v2074
        %v2114 = vunpack.c.l.b16 %v2075
        %v2115 = vunpack.c.l.b16 %v2076
        %v2116 = vunpack.c.l.b16 %v2077
        %v2117 = vunpack.c.l.b16 %v2078
        %v2118 = vunpack.c.l.b16 %v2079
        %v2119 = vunpack.c.l.b16 %v2080
        %v2120 = vunpack.c.l.b16 %v2081
        %v2121 = vunpack.c.l.b16 %v2082
        %v2122 = vunpack.c.l.b16 %v2083
        %v2123 = vunpack.c.l.b16 %v2084
        %v2124 = vunpack.c.l.b16 %v2085
        %v2125 = vunpack.c.l.b16 %v2086
        %v2126 = vpack.c.b16 %v2111, %v2110
        %v2127 = vpack.c.b16 %v2113, %v2112
        %v2128 = vpack.c.b16 %v2115, %v2114
        %v2129 = vpack.c.b16 %v2117, %v2116
        %v2130 = vpack.c.b16 %v2119, %v2118
        %v2131 = vpack.c.b16 %v2121, %v2120
        %v2132 = vpack.c.b16 %v2123, %v2122
        %v2133 = vpack.c.b16 %v2125, %v2124
        %2142 = vmatprep.subr.bf16.mxu0 0
        %2143 = vmatpush1.bf16.msra.mxu0 %v2133
        %2144 = vmatprep.subr.bf16.mxu0 0
        %2145 = vmatpush1.bf16.msra.mxu0 %v2132
        %2146 = vmatprep.subr.bf16.mxu0 0
        %2147 = vmatpush1.bf16.msra.mxu0 %v2131
        %2148 = vmatprep.subr.bf16.mxu0 0
        %2149 = vmatpush1.bf16.msra.mxu0 %v2130
        %2150 = vmatprep.subr.bf16.mxu0 0
        %2151 = vmatpush1.bf16.msra.mxu0 %v2129
        %2152 = vmatprep.subr.bf16.mxu0 0
        %2153 = vmatpush1.bf16.msra.mxu0 %v2128
        %2154 = vmatprep.subr.bf16.mxu0 0
        %2155 = vmatpush1.bf16.msra.mxu0 %v2127
        %2156 = vmatprep.subr.bf16.mxu0 0
        %2157 = vmatpush1.bf16.msra.mxu0 %v2126
        %2158 = vmatprep.subr.bf16.mxu0 0
        %2159 = vmatpush2.bf16.msra.mxu0 0
        %2160 = vmatprep.subr.bf16.mxu0 0
        %2161 = vmatpush2.bf16.msra.mxu0 0
        %2162 = vmatprep.subr.bf16.mxu0 0
        %2163 = vmatpush2.bf16.msra.mxu0 0
        %2164 = vmatprep.subr.bf16.mxu0 0
        %2165 = vmatpush2.bf16.msra.mxu0 0
        %2166 = vmatprep.subr.bf16.mxu0 0
        %2167 = vmatpush2.bf16.msra.mxu0 0
        %2168 = vmatprep.subr.bf16.mxu0 0
        %2169 = vmatpush2.bf16.msra.mxu0 0
        %2170 = vmatprep.subr.bf16.mxu0 0
        %2171 = vmatpush2.bf16.msra.mxu0 0
        %2172 = vmatprep.subr.bf16.mxu0 0
        %2173 = vmatpush2.bf16.msra.mxu0 0
        %2174 = vmatprep.mubr.bf16.mxu0 0
        %2175 = vmatmul.mubr.bf16.gmra.mxu0 %v2052
        %v2176 = vpop.f32.mrf.mxu0
        %v2177 = vadd.f32 %v2092, %v2176
        %v2178 = vpop.f32.mrf.mxu0
        %v2179 = vpop.f32.mrf.mxu0
        %v2180 = vadd.f32 %v2092, %v2179
        %v2181 = vpop.f32.mrf.mxu0
        %2182 = vmatprep.mubr.bf16.mxu0 0
        %2183 = vmatmul.mubr.bf16.gmra.mxu0 %v2053
        %v2184 = vpop.f32.mrf.mxu0
        %v2185 = vadd.f32 %v2092, %v2184
        %v2186 = vpop.f32.mrf.mxu0
        %v2187 = vpop.f32.mrf.mxu0
        %v2188 = vadd.f32 %v2092, %v2187
        %v2189 = vpop.f32.mrf.mxu0
        %2190 = vmatprep.mubr.bf16.mxu0 0
        %2191 = vmatmul.mubr.bf16.gmra.mxu0 %v2054
        %v2192 = vpop.f32.mrf.mxu0
        %v2193 = vadd.f32 %v2092, %v2192
        %v2194 = vpop.f32.mrf.mxu0
        %v2195 = vpop.f32.mrf.mxu0
        %v2196 = vadd.f32 %v2092, %v2195
        %v2197 = vpop.f32.mrf.mxu0
        %2198 = vmatprep.mubr.bf16.mxu0 0
        %2199 = vmatmul.mubr.bf16.gmra.mxu0 %v2055
        %v2200 = vpop.f32.mrf.mxu0
        %v2201 = vadd.f32 %v2092, %v2200
        %v2202 = vpop.f32.mrf.mxu0
        %v2203 = vpop.f32.mrf.mxu0
        %v2204 = vadd.f32 %v2092, %v2203
        %v2205 = vpop.f32.mrf.mxu0
        %2206 = vmatprep.mubr.bf16.mxu0 0
        %2207 = vmatmul.mubr.bf16.gmra.mxu0 %v2056
        %v2208 = vpop.f32.mrf.mxu0
        %v2209 = vadd.f32 %v2092, %v2208
        %v2210 = vpop.f32.mrf.mxu0
        %v2211 = vpop.f32.mrf.mxu0
        %v2212 = vadd.f32 %v2092, %v2211
        %v2213 = vpop.f32.mrf.mxu0
        %2214 = vmatprep.mubr.bf16.mxu0 0
        %2215 = vmatmul.mubr.bf16.gmra.mxu0 %v2057
        %v2216 = vpop.f32.mrf.mxu0
        %v2217 = vadd.f32 %v2092, %v2216
        %v2218 = vpop.f32.mrf.mxu0
        %v2219 = vpop.f32.mrf.mxu0
        %v2220 = vadd.f32 %v2092, %v2219
        %v2221 = vpop.f32.mrf.mxu0
        %2222 = vmatprep.mubr.bf16.mxu0 0
        %2223 = vmatmul.mubr.bf16.gmra.mxu0 %v2058
        %v2224 = vpop.f32.mrf.mxu0
        %v2225 = vadd.f32 %v2092, %v2224
        %v2226 = vpop.f32.mrf.mxu0
        %v2227 = vpop.f32.mrf.mxu0
        %v2228 = vadd.f32 %v2092, %v2227
        %v2229 = vpop.f32.mrf.mxu0
        %2230 = vmatprep.mubr.bf16.mxu0 0
        %2231 = vmatmul.mubr.bf16.gmra.mxu0 %v2059
        %v2232 = vpop.f32.mrf.mxu0
        %v2233 = vadd.f32 %v2092, %v2232
        %v2234 = vpop.f32.mrf.mxu0
        %v2235 = vpop.f32.mrf.mxu0
        %v2236 = vadd.f32 %v2092, %v2235
        %v2237 = vpop.f32.mrf.mxu0
        %2238 = vmatprep.mubr.bf16.mxu0 0
        %2239 = vmatmul.mubr.bf16.gmra.mxu0 %v2060
        %v2240 = vpop.f32.mrf.mxu0
        %v2241 = vadd.f32 %v2092, %v2240
        %v2242 = vpop.f32.mrf.mxu0
        %v2243 = vpop.f32.mrf.mxu0
        %v2244 = vadd.f32 %v2092, %v2243
        %v2245 = vpop.f32.mrf.mxu0
        %2246 = vmatprep.mubr.bf16.mxu0 0
        %2247 = vmatmul.mubr.bf16.gmra.mxu0 %v2061
        %v2248 = vpop.f32.mrf.mxu0
        %v2249 = vadd.f32 %v2092, %v2248
        %v2250 = vpop.f32.mrf.mxu0
        %v2251 = vpop.f32.mrf.mxu0
        %v2252 = vadd.f32 %v2092, %v2251
        %v2253 = vpop.f32.mrf.mxu0
        %2254 = vmatprep.mubr.bf16.mxu0 0
        %2255 = vmatmul.mubr.bf16.gmra.mxu0 %v2062
        %v2256 = vpop.f32.mrf.mxu0
        %v2257 = vadd.f32 %v2092, %v2256
        %v2258 = vpop.f32.mrf.mxu0
        %v2259 = vpop.f32.mrf.mxu0
        %v2260 = vadd.f32 %v2092, %v2259
        %v2261 = vpop.f32.mrf.mxu0
        %2262 = vmatprep.mubr.bf16.mxu0 0
        %2263 = vmatmul.mubr.bf16.gmra.mxu0 %v2063
        %v2264 = vpop.f32.mrf.mxu0
        %v2265 = vadd.f32 %v2092, %v2264
        %v2266 = vpop.f32.mrf.mxu0
        %v2267 = vpop.f32.mrf.mxu0
        %v2268 = vadd.f32 %v2092, %v2267
        %v2269 = vpop.f32.mrf.mxu0
        %2270 = vmatprep.mubr.bf16.mxu0 0
        %2271 = vmatmul.mubr.bf16.gmra.mxu0 %v2064
        %v2272 = vpop.f32.mrf.mxu0
        %v2273 = vadd.f32 %v2092, %v2272
        %v2274 = vpop.f32.mrf.mxu0
        %v2275 = vpop.f32.mrf.mxu0
        %v2276 = vadd.f32 %v2092, %v2275
        %v2277 = vpop.f32.mrf.mxu0
        %2278 = vmatprep.mubr.bf16.mxu0 0
        %2279 = vmatmul.mubr.bf16.gmra.mxu0 %v2065
        %v2280 = vpop.f32.mrf.mxu0
        %v2281 = vadd.f32 %v2092, %v2280
        %v2282 = vpop.f32.mrf.mxu0
        %v2283 = vpop.f32.mrf.mxu0
        %v2284 = vadd.f32 %v2092, %v2283
        %v2285 = vpop.f32.mrf.mxu0
        %2286 = vmatprep.mubr.bf16.mxu0 0
        %2287 = vmatmul.mubr.bf16.gmra.mxu0 %v2066
        %v2288 = vpop.f32.mrf.mxu0
        %v2289 = vadd.f32 %v2092, %v2288
        %v2290 = vpop.f32.mrf.mxu0
        %v2291 = vpop.f32.mrf.mxu0
        %v2292 = vadd.f32 %v2092, %v2291
        %v2293 = vpop.f32.mrf.mxu0
        %2294 = vmatprep.mubr.bf16.mxu0 0
        %2295 = vmatmul.mubr.bf16.gmra.mxu0 %v2067
        %v2296 = vpop.f32.mrf.mxu0
        %v2297 = vadd.f32 %v2092, %v2296
        %v2298 = vpop.f32.mrf.mxu0
        %v2299 = vpop.f32.mrf.mxu0
        %v2300 = vadd.f32 %v2092, %v2299
        %v2301 = vpop.f32.mrf.mxu0
        %2302 = vmatprep.mubr.bf16.mxu0 0
        %2303 = vmatmul.mubr.bf16.gmra.mxu0 %v2068
        %v2304 = vpop.f32.mrf.mxu0
        %v2305 = vadd.f32 %v2092, %v2304
        %v2306 = vpop.f32.mrf.mxu0
        %v2307 = vpop.f32.mrf.mxu0
        %v2308 = vadd.f32 %v2092, %v2307
        %v2309 = vpop.f32.mrf.mxu0
        %2310 = vmatprep.mubr.bf16.mxu0 0
        %2311 = vmatmul.mubr.bf16.gmra.mxu0 %v2069
        %v2312 = vpop.f32.mrf.mxu0
        %v2313 = vadd.f32 %v2092, %v2312
        %v2314 = vpop.f32.mrf.mxu0
        %v2315 = vpop.f32.mrf.mxu0
        %v2316 = vadd.f32 %v2092, %v2315
        %v2317 = vpop.f32.mrf.mxu0
        %2318 = vmatprep.mubr.bf16.mxu0 0
        %2319 = vmatmul.mubr.bf16.gmra.mxu0 %v2070
        %v2320 = vpop.f32.mrf.mxu0
        %v2321 = vadd.f32 %v2092, %v2320
        %v2322 = vpop.f32.mrf.mxu0
        %v2323 = vpop.f32.mrf.mxu0
        %v2324 = vadd.f32 %v2092, %v2323
        %v2325 = vpop.f32.mrf.mxu0
        %2326 = vdwg.mxu0
        %vm2327 = vcmask 130048
        %2328 = vst.msk [vmem:[%s286] sm:$0xff] %vm2327, %v2177
        %2329 = vst.msk [vmem:[%s286 + $0x8] sm:$0xff] %vm2327, %v2180
        %2330 = vst.msk [vmem:[%s286 + $0x10] sm:$0xff] %vm2327, %v2185
        %2331 = vst.msk [vmem:[%s286 + $0x18] sm:$0xff] %vm2327, %v2188
        %2332 = vst.msk [vmem:[%s286 + $0x20] sm:$0xff] %vm2327, %v2193
        %2333 = vst.msk [vmem:[%s286 + $0x28] sm:$0xff] %vm2327, %v2196
        %2334 = vst.msk [vmem:[%s286 + $0x30] sm:$0xff] %vm2327, %v2201
        %2335 = vst.msk [vmem:[%s286 + $0x38] sm:$0xff] %vm2327, %v2204
        %2336 = vst.msk [vmem:[%s286 + $0x40] sm:$0xff] %vm2327, %v2209
        %2337 = vst.msk [vmem:[%s286 + $0x48] sm:$0xff] %vm2327, %v2212
        %2338 = vst.msk [vmem:[%s286 + $0x50] sm:$0xff] %vm2327, %v2217
        %2339 = vst.msk [vmem:[%s286 + $0x58] sm:$0xff] %vm2327, %v2220
        %2340 = vst.msk [vmem:[%s286 + $0x60] sm:$0xff] %vm2327, %v2225
        %2341 = vst.msk [vmem:[%s286 + $0x68] sm:$0xff] %vm2327, %v2228
        %2342 = vst.msk [vmem:[%s286 + $0x70] sm:$0xff] %vm2327, %v2233
        %2343 = vst.msk [vmem:[%s286 + $0x78] sm:$0xff] %vm2327, %v2236
        %2344 = vst.msk [vmem:[%s286 + $0x80] sm:$0xff] %vm2327, %v2241
        %2345 = vst.msk [vmem:[%s286 + $0x88] sm:$0xff] %vm2327, %v2244
        %2346 = vst.msk [vmem:[%s286 + $0x90] sm:$0xff] %vm2327, %v2249
        %2347 = vst.msk [vmem:[%s286 + $0x98] sm:$0xff] %vm2327, %v2252
        %2348 = vst.msk [vmem:[%s286 + $0xa0] sm:$0xff] %vm2327, %v2257
        %2349 = vst.msk [vmem:[%s286 + $0xa8] sm:$0xff] %vm2327, %v2260
        %2350 = vst.msk [vmem:[%s286 + $0xb0] sm:$0xff] %vm2327, %v2265
        %2351 = vst.msk [vmem:[%s286 + $0xb8] sm:$0xff] %vm2327, %v2268
        %2352 = vst.msk [vmem:[%s286 + $0xc0] sm:$0xff] %vm2327, %v2273
        %2353 = vst.msk [vmem:[%s286 + $0xc8] sm:$0xff] %vm2327, %v2276
        %2354 = vst.msk [vmem:[%s286 + $0xd0] sm:$0xff] %vm2327, %v2281
        %2355 = vst.msk [vmem:[%s286 + $0xd8] sm:$0xff] %vm2327, %v2284
        %2356 = vst.msk [vmem:[%s286 + $0xe0] sm:$0xff] %vm2327, %v2289
        %2357 = vst.msk [vmem:[%s286 + $0xe8] sm:$0xff] %vm2327, %v2292
        %2358 = vst.msk [vmem:[%s286 + $0xf0] sm:$0xff] %vm2327, %v2297
        %2359 = vst.msk [vmem:[%s286 + $0xf8] sm:$0xff] %vm2327, %v2300
        %2360 = vst.msk [vmem:[%s286 + $0x100] sm:$0xff] %vm2327, %v2305
        %2361 = vst.msk [vmem:[%s286 + $0x108] sm:$0xff] %vm2327, %v2308
        %2362 = vst.msk [vmem:[%s286 + $0x110] sm:$0xff] %vm2327, %v2313
        %2363 = vst.msk [vmem:[%s286 + $0x118] sm:$0xff] %vm2327, %v2316
        %2364 = vst.msk [vmem:[%s286 + $0x120] sm:$0xff] %vm2327, %v2321
        %2365 = vst.msk [vmem:[%s286 + $0x128] sm:$0xff] %vm2327, %v2324
        %s2366 = sand.u32 %s139, 1
        %s2367 = sand.u32 %s139, 1
        %s2368 = smul.addr %s2367, 304
        %s2369 = scalar_lea.vmem [#allocation9], %s2368
        // Predicated region
        $region57: #{tpu_custom_call.1} parent=39 // pred_check
          %p2370 = pneg %p149
        $region58: #{tpu_custom_call.1} parent=39 // pred_check_branch
          %2372 = sbr.rel (%p2370) target = $region60
        $region59: #{tpu_custom_call.1} parent=39 // pred_region
          %s2373 = smul.u32 38, %s21
          %s2374 = ssub.s32 75, %s2373
          %p2375 = scmp.lt.s32.totalorder %s2374, 38
          %s2376 = scalar_select %p2375, %s2374, 38
          %s2377 = smul.u32 128, %s2376
          %p2378 = scmp.ne.s32.totalorder 0, %s2377
          %s2379 = smul.addr %s2373, 8
          %s2380 = scalar_lea.vmem %s5, %s2379
          // Predicated region
          $region61: #{tpu_custom_call.1} parent=59 // pred_check
            %p2381 = pneg %p2378
          $region62: #{tpu_custom_call.1} parent=59 // pred_check_branch
            %2383 = sbr.rel (%p2381) target = $region64
          $region63: #{tpu_custom_call.1} parent=59 // pred_region
            // Predicated region
            $region65: #{tpu_custom_call.1} parent=63 // pred_check
              _
            $region66: #{tpu_custom_call.1} parent=63 // pred_check_branch
              %2385 = sbr.rel (0) target = $region68
            $region67: #{tpu_custom_call.1} parent=63 // pred_region
              // Predicated region
              $region87: #{tpu_custom_call.1} parent=67 // pred_check
                _
              $region88: #{tpu_custom_call.1} parent=67 // pred_check_branch
                %2510 = sbr.rel (0) target = $region90
              $region89: #{tpu_custom_call.1} parent=67 // pred_region
                %s2511 = sdiv.u32.pop %s2376, 38
                %s2512 = srem.u32.pop %s2376, 38
                // While loop
                $region91: #{tpu_custom_call.1} parent=89 // loop_pre_header
                  _
                $region92: #{tpu_custom_call.1} parent=89 // loop_header
                  %s2514 = sphi 0, %s2516
                  %p2515 = scmp.ge.s32.totalorder %s2514, %s2511
                  %s2519 = sphi 0, %s2600
                  %s2520 = sphi %s2369, %s2603
                  %s2521 = sphi %s2380, %s2604
                $region93: #{tpu_custom_call.1} parent=89 // loop_header_branch
                  %2518 = sbr.rel (%p2515) target = $region97
                $region94: #{tpu_custom_call.1} parent=89 // loop_body
                  %v2522 = vld [vmem:[%s2520] sm:$0xff]
                  %2523 = vst [vmem:[%s2521] sm:$0xff] %v2522
                  %v2524 = vld [vmem:[%s2520 + $0x8] sm:$0xff]
                  %2525 = vst [vmem:[%s2521 + $0x8] sm:$0xff] %v2524
                  %v2526 = vld [vmem:[%s2520 + $0x10] sm:$0xff]
                  %2527 = vst [vmem:[%s2521 + $0x10] sm:$0xff] %v2526
                  %v2528 = vld [vmem:[%s2520 + $0x18] sm:$0xff]
                  %2529 = vst [vmem:[%s2521 + $0x18] sm:$0xff] %v2528
                  %v2530 = vld [vmem:[%s2520 + $0x20] sm:$0xff]
                  %2531 = vst [vmem:[%s2521 + $0x20] sm:$0xff] %v2530
                  %v2532 = vld [vmem:[%s2520 + $0x28] sm:$0xff]
                  %2533 = vst [vmem:[%s2521 + $0x28] sm:$0xff] %v2532
                  %v2534 = vld [vmem:[%s2520 + $0x30] sm:$0xff]
                  %2535 = vst [vmem:[%s2521 + $0x30] sm:$0xff] %v2534
                  %v2536 = vld [vmem:[%s2520 + $0x38] sm:$0xff]
                  %2537 = vst [vmem:[%s2521 + $0x38] sm:$0xff] %v2536
                  %v2538 = vld [vmem:[%s2520 + $0x40] sm:$0xff]
                  %2539 = vst [vmem:[%s2521 + $0x40] sm:$0xff] %v2538
                  %v2540 = vld [vmem:[%s2520 + $0x48] sm:$0xff]
                  %2541 = vst [vmem:[%s2521 + $0x48] sm:$0xff] %v2540
                  %v2542 = vld [vmem:[%s2520 + $0x50] sm:$0xff]
                  %2543 = vst [vmem:[%s2521 + $0x50] sm:$0xff] %v2542
                  %v2544 = vld [vmem:[%s2520 + $0x58] sm:$0xff]
                  %2545 = vst [vmem:[%s2521 + $0x58] sm:$0xff] %v2544
                  %v2546 = vld [vmem:[%s2520 + $0x60] sm:$0xff]
                  %2547 = vst [vmem:[%s2521 + $0x60] sm:$0xff] %v2546
                  %v2548 = vld [vmem:[%s2520 + $0x68] sm:$0xff]
                  %2549 = vst [vmem:[%s2521 + $0x68] sm:$0xff] %v2548
                  %v2550 = vld [vmem:[%s2520 + $0x70] sm:$0xff]
                  %2551 = vst [vmem:[%s2521 + $0x70] sm:$0xff] %v2550
                  %v2552 = vld [vmem:[%s2520 + $0x78] sm:$0xff]
                  %2553 = vst [vmem:[%s2521 + $0x78] sm:$0xff] %v2552
                  %v2554 = vld [vmem:[%s2520 + $0x80] sm:$0xff]
                  %2555 = vst [vmem:[%s2521 + $0x80] sm:$0xff] %v2554
                  %v2556 = vld [vmem:[%s2520 + $0x88] sm:$0xff]
                  %2557 = vst [vmem:[%s2521 + $0x88] sm:$0xff] %v2556
                  %v2558 = vld [vmem:[%s2520 + $0x90] sm:$0xff]
                  %2559 = vst [vmem:[%s2521 + $0x90] sm:$0xff] %v2558
                  %v2560 = vld [vmem:[%s2520 + $0x98] sm:$0xff]
                  %2561 = vst [vmem:[%s2521 + $0x98] sm:$0xff] %v2560
                  %v2562 = vld [vmem:[%s2520 + $0xa0] sm:$0xff]
                  %2563 = vst [vmem:[%s2521 + $0xa0] sm:$0xff] %v2562
                  %v2564 = vld [vmem:[%s2520 + $0xa8] sm:$0xff]
                  %2565 = vst [vmem:[%s2521 + $0xa8] sm:$0xff] %v2564
                  %v2566 = vld [vmem:[%s2520 + $0xb0] sm:$0xff]
                  %2567 = vst [vmem:[%s2521 + $0xb0] sm:$0xff] %v2566
                  %v2568 = vld [vmem:[%s2520 + $0xb8] sm:$0xff]
                  %2569 = vst [vmem:[%s2521 + $0xb8] sm:$0xff] %v2568
                  %v2570 = vld [vmem:[%s2520 + $0xc0] sm:$0xff]
                  %2571 = vst [vmem:[%s2521 + $0xc0] sm:$0xff] %v2570
                  %v2572 = vld [vmem:[%s2520 + $0xc8] sm:$0xff]
                  %2573 = vst [vmem:[%s2521 + $0xc8] sm:$0xff] %v2572
                  %v2574 = vld [vmem:[%s2520 + $0xd0] sm:$0xff]
                  %2575 = vst [vmem:[%s2521 + $0xd0] sm:$0xff] %v2574
                  %v2576 = vld [vmem:[%s2520 + $0xd8] sm:$0xff]
                  %2577 = vst [vmem:[%s2521 + $0xd8] sm:$0xff] %v2576
                  %v2578 = vld [vmem:[%s2520 + $0xe0] sm:$0xff]
                  %2579 = vst [vmem:[%s2521 + $0xe0] sm:$0xff] %v2578
                  %v2580 = vld [vmem:[%s2520 + $0xe8] sm:$0xff]
                  %2581 = vst [vmem:[%s2521 + $0xe8] sm:$0xff] %v2580
                  %v2582 = vld [vmem:[%s2520 + $0xf0] sm:$0xff]
                  %2583 = vst [vmem:[%s2521 + $0xf0] sm:$0xff] %v2582
                  %v2584 = vld [vmem:[%s2520 + $0xf8] sm:$0xff]
                  %2585 = vst [vmem:[%s2521 + $0xf8] sm:$0xff] %v2584
                  %v2586 = vld [vmem:[%s2520 + $0x100] sm:$0xff]
                  %2587 = vst [vmem:[%s2521 + $0x100] sm:$0xff] %v2586
                  %v2588 = vld [vmem:[%s2520 + $0x108] sm:$0xff]
                  %2589 = vst [vmem:[%s2521 + $0x108] sm:$0xff] %v2588
                  %v2590 = vld [vmem:[%s2520 + $0x110] sm:$0xff]
                  %2591 = vst [vmem:[%s2521 + $0x110] sm:$0xff] %v2590
                  %v2592 = vld [vmem:[%s2520 + $0x118] sm:$0xff]
                  %2593 = vst [vmem:[%s2521 + $0x118] sm:$0xff] %v2592
                  %v2594 = vld [vmem:[%s2520 + $0x120] sm:$0xff]
                  %2595 = vst [vmem:[%s2521 + $0x120] sm:$0xff] %v2594
                  %v2596 = vld [vmem:[%s2520 + $0x128] sm:$0xff]
                  %2597 = vst [vmem:[%s2521 + $0x128] sm:$0xff] %v2596
                  %s2598 = sadd.s32 1, %s2519
                  %p2599 = scmp.ge.s32.totalorder %s2598, %s2511
                  %s2600 = scalar_select %p2599, 0, %s2598
                  %s2601 = smul.u32 %s2600, 304
                  %s2602 = smul.u32 %s2600, 304
                  %s2603 = scalar_lea.vmem %s2369, %s2601 [#allocation9]
                  %s2604 = scalar_lea.vmem %s2380, %s2602
                $region95: #{tpu_custom_call.1} parent=89 // loop_footer
                  %s2516 = sadd.s32 %s2514, 1
                $region96: #{tpu_custom_call.1} parent=89 // loop_footer_branch
                  %2513 = sbr.rel target = $region92
                $region97: #{tpu_custom_call.1} parent=89 // loop_exit
                  _
                %s2605 = sdiv.u32.pop %s2376, 38
                %s2606 = srem.u32.pop %s2376, 38
                %s2607 = smul.u32 %s2605, 38
                %s2608 = smul.u32 8, %s2607
                %s2609 = scalar_lea.vmem %s2369, %s2608 [#allocation9]
                %s2610 = smul.u32 8, %s2607
                %s2611 = scalar_lea.vmem %s2380, %s2610
                // While loop
                $region98: #{tpu_custom_call.1} parent=89 // loop_pre_header
                  _
                $region99: #{tpu_custom_call.1} parent=89 // loop_header
                  %s2613 = sphi 0, %s2615
                  %p2614 = scmp.ge.s32.totalorder %s2613, %s2606
                  %s2618 = sphi 0, %s2625
                  %s2619 = sphi %s2609, %s2628
                  %s2620 = sphi %s2611, %s2629
                $region100: #{tpu_custom_call.1} parent=89 // loop_header_branch
                  %2617 = sbr.rel (%p2614) target = $region104
                $region101: #{tpu_custom_call.1} parent=89 // loop_body
                  %v2621 = vld [vmem:[%s2619] sm:$0xff]
                  %2622 = vst [vmem:[%s2620] sm:$0xff] %v2621
                  %s2623 = sadd.s32 1, %s2618
                  %p2624 = scmp.ge.s32.totalorder %s2623, %s2606
                  %s2625 = scalar_select %p2624, 0, %s2623
                  %s2626 = smul.u32 %s2625, 8
                  %s2627 = smul.u32 %s2625, 8
                  %s2628 = scalar_lea.vmem %s2609, %s2626 [#allocation9]
                  %s2629 = scalar_lea.vmem %s2611, %s2627
                $region102: #{tpu_custom_call.1} parent=89 // loop_footer
                  %s2615 = sadd.s32 %s2613, 1
                $region103: #{tpu_custom_call.1} parent=89 // loop_footer_branch
                  %2612 = sbr.rel target = $region99
                $region104: #{tpu_custom_call.1} parent=89 // loop_exit
                  _
              $region90: #{tpu_custom_call.1} parent=67 // pred_fallthru
                _
              // Predicated region
              $region105: #{tpu_custom_call.1} parent=67 // pred_check
                _
              $region106: #{tpu_custom_call.1} parent=67 // pred_check_branch
                %2631 = sbr.rel target = $region108
              $region107: #{tpu_custom_call.1} parent=67 // pred_region
                _
              $region108: #{tpu_custom_call.1} parent=67 // pred_fallthru
                _
            $region68: #{tpu_custom_call.1} parent=63 // pred_fallthru
              _
            // Predicated region
            $region69: #{tpu_custom_call.1} parent=63 // pred_check
              _
            $region70: #{tpu_custom_call.1} parent=63 // pred_check_branch
              %2387 = sbr.rel target = $region72
            $region71: #{tpu_custom_call.1} parent=63 // pred_region
              %s2389 = ssub.s32 256, 1
              %s2390 = sdiv.u32.pop %s2376, 38
              %s2391 = srem.u32.pop %s2376, 38
              // While loop
              $region73: #{tpu_custom_call.1} parent=71 // loop_pre_header
                _
              $region74: #{tpu_custom_call.1} parent=71 // loop_header
                %s2393 = sphi 0, %s2395
                %p2394 = scmp.ge.s32.totalorder %s2393, %s2390
                %s2398 = sphi 0, %s2479
                %s2399 = sphi %s2369, %s2482
                %s2400 = sphi %s2380, %s2483
              $region75: #{tpu_custom_call.1} parent=71 // loop_header_branch
                %2397 = sbr.rel (%p2394) target = $region79
              $region76: #{tpu_custom_call.1} parent=71 // loop_body
                %v2401 = vld [vmem:[%s2399] sm:%s2389]
                %2402 = vst [vmem:[%s2400] sm:%s2389] %v2401
                %v2403 = vld [vmem:[%s2399 + $0x8] sm:%s2389]
                %2404 = vst [vmem:[%s2400 + $0x8] sm:%s2389] %v2403
                %v2405 = vld [vmem:[%s2399 + $0x10] sm:%s2389]
                %2406 = vst [vmem:[%s2400 + $0x10] sm:%s2389] %v2405
                %v2407 = vld [vmem:[%s2399 + $0x18] sm:%s2389]
                %2408 = vst [vmem:[%s2400 + $0x18] sm:%s2389] %v2407
                %v2409 = vld [vmem:[%s2399 + $0x20] sm:%s2389]
                %2410 = vst [vmem:[%s2400 + $0x20] sm:%s2389] %v2409
                %v2411 = vld [vmem:[%s2399 + $0x28] sm:%s2389]
                %2412 = vst [vmem:[%s2400 + $0x28] sm:%s2389] %v2411
                %v2413 = vld [vmem:[%s2399 + $0x30] sm:%s2389]
                %2414 = vst [vmem:[%s2400 + $0x30] sm:%s2389] %v2413
                %v2415 = vld [vmem:[%s2399 + $0x38] sm:%s2389]
                %2416 = vst [vmem:[%s2400 + $0x38] sm:%s2389] %v2415
                %v2417 = vld [vmem:[%s2399 + $0x40] sm:%s2389]
                %2418 = vst [vmem:[%s2400 + $0x40] sm:%s2389] %v2417
                %v2419 = vld [vmem:[%s2399 + $0x48] sm:%s2389]
                %2420 = vst [vmem:[%s2400 + $0x48] sm:%s2389] %v2419
                %v2421 = vld [vmem:[%s2399 + $0x50] sm:%s2389]
                %2422 = vst [vmem:[%s2400 + $0x50] sm:%s2389] %v2421
                %v2423 = vld [vmem:[%s2399 + $0x58] sm:%s2389]
                %2424 = vst [vmem:[%s2400 + $0x58] sm:%s2389] %v2423
                %v2425 = vld [vmem:[%s2399 + $0x60] sm:%s2389]
                %2426 = vst [vmem:[%s2400 + $0x60] sm:%s2389] %v2425
                %v2427 = vld [vmem:[%s2399 + $0x68] sm:%s2389]
                %2428 = vst [vmem:[%s2400 + $0x68] sm:%s2389] %v2427
                %v2429 = vld [vmem:[%s2399 + $0x70] sm:%s2389]
                %2430 = vst [vmem:[%s2400 + $0x70] sm:%s2389] %v2429
                %v2431 = vld [vmem:[%s2399 + $0x78] sm:%s2389]
                %2432 = vst [vmem:[%s2400 + $0x78] sm:%s2389] %v2431
                %v2433 = vld [vmem:[%s2399 + $0x80] sm:%s2389]
                %2434 = vst [vmem:[%s2400 + $0x80] sm:%s2389] %v2433
                %v2435 = vld [vmem:[%s2399 + $0x88] sm:%s2389]
                %2436 = vst [vmem:[%s2400 + $0x88] sm:%s2389] %v2435
                %v2437 = vld [vmem:[%s2399 + $0x90] sm:%s2389]
                %2438 = vst [vmem:[%s2400 + $0x90] sm:%s2389] %v2437
                %v2439 = vld [vmem:[%s2399 + $0x98] sm:%s2389]
                %2440 = vst [vmem:[%s2400 + $0x98] sm:%s2389] %v2439
                %v2441 = vld [vmem:[%s2399 + $0xa0] sm:%s2389]
                %2442 = vst [vmem:[%s2400 + $0xa0] sm:%s2389] %v2441
                %v2443 = vld [vmem:[%s2399 + $0xa8] sm:%s2389]
                %2444 = vst [vmem:[%s2400 + $0xa8] sm:%s2389] %v2443
                %v2445 = vld [vmem:[%s2399 + $0xb0] sm:%s2389]
                %2446 = vst [vmem:[%s2400 + $0xb0] sm:%s2389] %v2445
                %v2447 = vld [vmem:[%s2399 + $0xb8] sm:%s2389]
                %2448 = vst [vmem:[%s2400 + $0xb8] sm:%s2389] %v2447
                %v2449 = vld [vmem:[%s2399 + $0xc0] sm:%s2389]
                %2450 = vst [vmem:[%s2400 + $0xc0] sm:%s2389] %v2449
                %v2451 = vld [vmem:[%s2399 + $0xc8] sm:%s2389]
                %2452 = vst [vmem:[%s2400 + $0xc8] sm:%s2389] %v2451
                %v2453 = vld [vmem:[%s2399 + $0xd0] sm:%s2389]
                %2454 = vst [vmem:[%s2400 + $0xd0] sm:%s2389] %v2453
                %v2455 = vld [vmem:[%s2399 + $0xd8] sm:%s2389]
                %2456 = vst [vmem:[%s2400 + $0xd8] sm:%s2389] %v2455
                %v2457 = vld [vmem:[%s2399 + $0xe0] sm:%s2389]
                %2458 = vst [vmem:[%s2400 + $0xe0] sm:%s2389] %v2457
                %v2459 = vld [vmem:[%s2399 + $0xe8] sm:%s2389]
                %2460 = vst [vmem:[%s2400 + $0xe8] sm:%s2389] %v2459
                %v2461 = vld [vmem:[%s2399 + $0xf0] sm:%s2389]
                %2462 = vst [vmem:[%s2400 + $0xf0] sm:%s2389] %v2461
                %v2463 = vld [vmem:[%s2399 + $0xf8] sm:%s2389]
                %2464 = vst [vmem:[%s2400 + $0xf8] sm:%s2389] %v2463
                %v2465 = vld [vmem:[%s2399 + $0x100] sm:%s2389]
                %2466 = vst [vmem:[%s2400 + $0x100] sm:%s2389] %v2465
                %v2467 = vld [vmem:[%s2399 + $0x108] sm:%s2389]
                %2468 = vst [vmem:[%s2400 + $0x108] sm:%s2389] %v2467
                %v2469 = vld [vmem:[%s2399 + $0x110] sm:%s2389]
                %2470 = vst [vmem:[%s2400 + $0x110] sm:%s2389] %v2469
                %v2471 = vld [vmem:[%s2399 + $0x118] sm:%s2389]
                %2472 = vst [vmem:[%s2400 + $0x118] sm:%s2389] %v2471
                %v2473 = vld [vmem:[%s2399 + $0x120] sm:%s2389]
                %2474 = vst [vmem:[%s2400 + $0x120] sm:%s2389] %v2473
                %v2475 = vld [vmem:[%s2399 + $0x128] sm:%s2389]
                %2476 = vst [vmem:[%s2400 + $0x128] sm:%s2389] %v2475
                %s2477 = sadd.s32 1, %s2398
                %p2478 = scmp.ge.s32.totalorder %s2477, %s2390
                %s2479 = scalar_select %p2478, 0, %s2477
                %s2480 = smul.u32 %s2479, 304
                %s2481 = smul.u32 %s2479, 304
                %s2482 = scalar_lea.vmem %s2369, %s2480 [#allocation9]
                %s2483 = scalar_lea.vmem %s2380, %s2481
              $region77: #{tpu_custom_call.1} parent=71 // loop_footer
                %s2395 = sadd.s32 %s2393, 1
              $region78: #{tpu_custom_call.1} parent=71 // loop_footer_branch
                %2392 = sbr.rel target = $region74
              $region79: #{tpu_custom_call.1} parent=71 // loop_exit
                _
              %s2484 = sdiv.u32.pop %s2376, 38
              %s2485 = srem.u32.pop %s2376, 38
              %s2486 = smul.u32 %s2484, 38
              %s2487 = smul.u32 8, %s2486
              %s2488 = scalar_lea.vmem %s2369, %s2487 [#allocation9]
              %s2489 = smul.u32 8, %s2486
              %s2490 = scalar_lea.vmem %s2380, %s2489
              // While loop
              $region80: #{tpu_custom_call.1} parent=71 // loop_pre_header
                _
              $region81: #{tpu_custom_call.1} parent=71 // loop_header
                %s2492 = sphi 0, %s2494
                %p2493 = scmp.ge.s32.totalorder %s2492, %s2485
                %s2497 = sphi 0, %s2504
                %s2498 = sphi %s2488, %s2507
                %s2499 = sphi %s2490, %s2508
              $region82: #{tpu_custom_call.1} parent=71 // loop_header_branch
                %2496 = sbr.rel (%p2493) target = $region86
              $region83: #{tpu_custom_call.1} parent=71 // loop_body
                %v2500 = vld [vmem:[%s2498] sm:%s2389]
                %2501 = vst [vmem:[%s2499] sm:%s2389] %v2500
                %s2502 = sadd.s32 1, %s2497
                %p2503 = scmp.ge.s32.totalorder %s2502, %s2485
                %s2504 = scalar_select %p2503, 0, %s2502
                %s2505 = smul.u32 %s2504, 8
                %s2506 = smul.u32 %s2504, 8
                %s2507 = scalar_lea.vmem %s2488, %s2505 [#allocation9]
                %s2508 = scalar_lea.vmem %s2490, %s2506
              $region84: #{tpu_custom_call.1} parent=71 // loop_footer
                %s2494 = sadd.s32 %s2492, 1
              $region85: #{tpu_custom_call.1} parent=71 // loop_footer_branch
                %2491 = sbr.rel target = $region81
              $region86: #{tpu_custom_call.1} parent=71 // loop_exit
                _
            $region72: #{tpu_custom_call.1} parent=63 // pred_fallthru
              _
          $region64: #{tpu_custom_call.1} parent=59 // pred_fallthru
            _
          %2632 = vnop
        $region60: #{tpu_custom_call.1} parent=39 // pred_fallthru
          _
      $region40: #{tpu_custom_call.1} parent=5 // pred_fallthru
        _
      %p2633 = scmp.le.s32.totalorder 2, %s16
      // Predicated region
      $region109: #{tpu_custom_call.1} parent=5 // pred_check
        %p2634 = pneg %p2633
      $region110: #{tpu_custom_call.1} parent=5 // pred_check_branch
        %2636 = sbr.rel (%p2634) target = $region112
      $region111: #{tpu_custom_call.1} parent=5 // pred_region
        %s2637 = ssub.s32 %s16, 2
        // Predicated region
        $region113: #{tpu_custom_call.1} parent=111 // pred_check
          %p2638 = pneg %p155
        $region114: #{tpu_custom_call.1} parent=111 // pred_check_branch
          %2640 = sbr.rel (%p2638) target = $region116
        $region115: #{tpu_custom_call.1} parent=111 // pred_region
          %s2641 = sand.u32 %s140, 1
          %s2642 = sand.u32 %s140, 1
          %s2643 = smul.addr %s2642, 304
          %s2644 = scalar_lea.vmem [#allocation9], %s2643
        $region116: #{tpu_custom_call.1} parent=111 // pred_fallthru
          _
      $region112: #{tpu_custom_call.1} parent=5 // pred_fallthru
        _
    $region6: #{tpu_custom_call.1} parent=1 // loop_footer
      %s20 = sadd.s32 1, %s16
    $region7: #{tpu_custom_call.1} parent=1 // loop_footer_branch
      %15 = sbr.rel target = $region3
    $region8: #{tpu_custom_call.1} parent=1 // loop_exit
      _
    %2645 = vsyncpa [#allocation3], 1
    %s2646 = scalar_lea.sflag [#allocation3], 1
    %2647 = vsyncpa %s2646, 1
    %2648 = vsyncpa [#allocation5], 1
    %2649 = vsyncpa [#allocation8], 1

</llo_original>
